<compile_context>
chip_gen: v7x
topology: tpu7x:2x2x1
jax: 0.10.0
libtpu: 0.0.40
codegen_flags: <defaults>
</compile_context>

<pallas_src>
import functools

import jax
import jax.numpy as jnp
from jax.experimental import pallas as pl
from jax.experimental.pallas import tpu as pltpu

N_LAYERS = 8
LATENT_DIM = 128          # hidden width == lane width, no hidden padding needed
IN_DIM = 3                # x(2) + sigma(1)
IN_PAD = 8                # narrow input slab width (one f32 sublane tile)
OUT_DIM = 2
FEAT_PAD = 128            # padded feature width used inside the kernel


def _softplus(x):
    # Numerically stable softplus (matches torch.nn.Softplus, beta=1):
    # logaddexp(x, 0) = max(x, 0) + log1p(exp(-|x|)); exp/log1p hit the EUP.
    return jnp.logaddexp(x, 0.0)


def scorenet_kernel(xin_ref, w0_ref, w_ref, b_ref, o_ref):
    """One batch tile of the full MLP.

    xin_ref: (TN, 8)        f32 rows [x0, x1, sigma, 0, ...]
    w0_ref:  (8, 128)       f32 first-layer weight (rows 3.. are zero padding)
    w_ref:   (8, 128, 128)  bf16 weights for layers 1..7 and the output layer
    b_ref:   (9, 1, 128)    f32 biases (zero padded)
    o_ref:   (TN, 128)      bf16 padded output (first 2 lanes valid)
    """
    x8 = xin_ref[...]                      # (TN, 8) f32
    sig = x8[:, 2:3]                       # (TN, 1) f32 sigma per row

    # Layer 0: only 3 valid input features -> three broadcast FMAs (VPU);
    # avoids padding the input to 128 lanes in HBM or in the kernel.
    w0 = w0_ref[...]
    z = (x8[:, 0:1] * w0[0:1, :]
         + x8[:, 1:2] * w0[1:2, :]
         + sig * w0[2:3, :]
         + b_ref[0])
    h = _softplus(z).astype(jnp.bfloat16)

    # Layers 1..7: bf16 MXU matmuls with f32 accumulation (static unroll).
    for l in range(1, N_LAYERS):
        z = jnp.dot(h, w_ref[l - 1], preferred_element_type=jnp.float32) + b_ref[l]
        h = _softplus(z).astype(jnp.bfloat16)

    # Output layer (padded to 128 lanes; padded weight cols are exactly 0).
    out = jnp.dot(h, w_ref[N_LAYERS - 1],
                  preferred_element_type=jnp.float32) + b_ref[N_LAYERS]

    # Divide by sigma via the EUP reciprocal path (co-issues, ~free).
    o_ref[...] = (out * pl.reciprocal(sig, approx=True)).astype(o_ref.dtype)


def init_params(key):
    """Deterministic params mimicking torch.nn.Linear default init
    (U[-1/sqrt(fan_in), +1/sqrt(fan_in)])."""
    ws, bs = [], []
    dims = [(IN_DIM, LATENT_DIM)] + [(LATENT_DIM, LATENT_DIM)] * (N_LAYERS - 1) \
         + [(LATENT_DIM, OUT_DIM)]
    for (fan_in, fan_out) in dims:
        key, kw, kb = jax.random.split(key, 3)
        bound = 1.0 / jnp.sqrt(fan_in)
        # stored as (in, out) so the kernel computes h @ W
        ws.append(jax.random.uniform(kw, (fan_in, fan_out), jnp.float32, -bound, bound))
        bs.append(jax.random.uniform(kb, (fan_out,), jnp.float32, -bound, bound))
    return ws, bs


def pack_params(ws, bs):
    """Pack params for the kernel: f32 (8,128) first layer, bf16 (8,128,128)
    for the remaining layers, f32 (9,1,128) biases (all zero padded)."""
    w0 = jnp.zeros((IN_PAD, FEAT_PAD), jnp.float32).at[:IN_DIM, :].set(ws[0])
    w_rest = jnp.zeros((N_LAYERS, FEAT_PAD, FEAT_PAD), jnp.bfloat16)
    for l in range(1, N_LAYERS + 1):
        w = ws[l]
        fi, fo = w.shape
        w_rest = w_rest.at[l - 1, :fi, :fo].set(w.astype(jnp.bfloat16))
    b_stack = jnp.zeros((N_LAYERS + 1, 1, FEAT_PAD), jnp.float32)
    for l, b in enumerate(bs):
        b_stack = b_stack.at[l, 0, :b.shape[0]].set(b)
    return w0, w_rest, b_stack


def _choose_tiling(n, tile_n, align=16):
    """Pick a 16-aligned batch tile; prefer >=2 grid steps (dual-TC sharding)."""
    na = max(align, -(-n // align) * align)
    tile_n = max(align, min((tile_n // align) * align, na))
    if na >= 2 * align and na // tile_n < 2:
        half = -(-na // (2 * align)) * align     # ceil(na/2) rounded up to align
        tile_n = min(tile_n, half)
    n_pad = -(-na // tile_n) * tile_n
    return tile_n, n_pad


@functools.partial(jax.jit, static_argnums=(4,))
def _scorenet_pallas(xin, w0, w_rest, b_stack, tile_n):
    n_pad = xin.shape[0]
    grid = (n_pad // tile_n,)
    return pl.pallas_call(
        scorenet_kernel,
        out_shape=jax.ShapeDtypeStruct((n_pad, FEAT_PAD), jnp.bfloat16),
        grid_spec=pltpu.PrefetchScalarGridSpec(
            num_scalar_prefetch=0,
            grid=grid,
            in_specs=[
                pl.BlockSpec((tile_n, IN_PAD), lambda i: (i, 0)),
                # Constant index_maps -> weights/biases stay resident in VMEM.
                pl.BlockSpec((IN_PAD, FEAT_PAD), lambda i: (0, 0)),
                pl.BlockSpec((N_LAYERS, FEAT_PAD, FEAT_PAD), lambda i: (0, 0, 0)),
                pl.BlockSpec((N_LAYERS + 1, 1, FEAT_PAD), lambda i: (0, 0, 0)),
            ],
            out_specs=pl.BlockSpec((tile_n, FEAT_PAD), lambda i: (i, 0)),
        ),
        compiler_params=pltpu.CompilerParams(
            dimension_semantics=("parallel",)),
    )(xin, w0, w_rest, b_stack)


def scorenet_forward(x, sigmas, w0, w_rest, b_stack, tile_n=512):
    """x: (N, 2); sigmas: (N, 1) array or python float. Returns (N, 2) f32."""
    x = jnp.asarray(x, jnp.float32)
    n = x.shape[0]
    if isinstance(sigmas, float):
        sigmas = jnp.full((n, 1), sigmas, jnp.float32)
    sigmas = jnp.asarray(sigmas, jnp.float32)
    if sigmas.ndim == 0:
        sigmas = jnp.full((n, 1), sigmas, jnp.float32)
    sigmas = sigmas.reshape(n, 1)

    tile_n, n_pad = _choose_tiling(n, tile_n)

    # Narrow input slab: [x0, x1, sigma, 0...]; dead rows get sigma=1 (no 1/0).
    xin = jnp.zeros((n_pad, IN_PAD), jnp.float32)
    xin = xin.at[:, 2].set(1.0)
    xin = xin.at[:n, :2].set(x)
    xin = xin.at[:n, 2].set(sigmas[:, 0])

    out_pad = _scorenet_pallas(xin, w0, w_rest, b_stack, tile_n)
    return out_pad[:n, :OUT_DIM].astype(jnp.float32)


def scorenet_reference(x, sigmas, ws, bs):
    """Pure-JAX f32 reference of the PyTorch forward (correctness check)."""
    h = jnp.concatenate([x, sigmas], axis=-1).astype(jnp.float32)
    for l in range(N_LAYERS):
        h = _softplus(h @ ws[l] + bs[l])
    out = h @ ws[N_LAYERS] + bs[N_LAYERS]
    return out / sigmas


if __name__ == "__main__":
    key = jax.random.PRNGKey(0)
    k_param, k_x, k_s = jax.random.split(key, 3)

    ws, bs = init_params(k_param)
    w0, w_rest, b_stack = pack_params(ws, bs)

    # Small demo batch (bf16 MXU path -> loosened tolerance vs f32 reference).
    N = 8
    x = jax.random.normal(k_x, (N, 2), jnp.float32)
    sigmas = jax.random.uniform(k_s, (N, 1), jnp.float32, 0.1, 1.0)

    out = jax.block_until_ready(scorenet_forward(x, sigmas, w0, w_rest, b_stack))
    ref = scorenet_reference(x, sigmas, ws, bs)
    assert out.shape == (N, 2)
    assert jnp.allclose(out, ref, atol=1e-1, rtol=1e-1), (out, ref)

    # Float-sigma code path (broadcast like the torch module).
    out_f = jax.block_until_ready(scorenet_forward(x, 0.5, w0, w_rest, b_stack))
    ref_f = scorenet_reference(x, jnp.full((N, 1), 0.5, jnp.float32), ws, bs)
    assert jnp.allclose(out_f, ref_f, atol=1e-1, rtol=1e-1)

    # Multi-tile path: non-multiple batch -> padding + >=2 grid steps.
    N2 = 600
    k_x2, k_s2 = jax.random.split(k_x)
    x2 = jax.random.normal(k_x2, (N2, 2), jnp.float32)
    s2 = jax.random.uniform(k_s2, (N2, 1), jnp.float32, 0.1, 1.0)
    out2 = jax.block_until_ready(scorenet_forward(x2, s2, w0, w_rest, b_stack))
    ref2 = scorenet_reference(x2, s2, ws, bs)
    assert out2.shape == (N2, 2)
    assert jnp.allclose(out2, ref2, atol=1e-1, rtol=1e-1)

    print("KERNEL_OK")
</pallas_src>

<mosaic_0001>
module attributes {stable_mosaic.version = 11 : i64} {
  func.func @scorenet_kernel(%arg0: i32, %arg1: memref<16x8xf32, #tpu.memory_space<vmem>>, %arg2: memref<8x128xf32, #tpu.memory_space<vmem>>, %arg3: memref<8x128x128xbf16, #tpu.memory_space<vmem>>, %arg4: memref<9x1x128xf32, #tpu.memory_space<vmem>>, %arg5: memref<16x128xbf16, #tpu.memory_space<vmem>>) attributes {dimension_semantics = [#tpu.dimension_semantics<parallel>], iteration_bounds = array<i64: 1>, scalar_prefetch = 0 : i64, scratch_operands = 0 : i64, tpu.core_type = #tpu.core_type<tc>, window_params = [{transform_indices = @transform_0, window_bounds = array<i64: 16, 8>}, {pipeline_mode = #tpu.pipeline_mode<synchronous>, transform_indices = @transform_1, window_bounds = array<i64: 8, 128>}, {pipeline_mode = #tpu.pipeline_mode<synchronous>, transform_indices = @transform_2, window_bounds = array<i64: 8, 128, 128>}, {pipeline_mode = #tpu.pipeline_mode<synchronous>, transform_indices = @transform_3, window_bounds = array<i64: 9, 1, 128>}, {transform_indices = @transform_4, window_bounds = array<i64: 16, 128>}]} {
    %c0 = arith.constant 0 : index
    %c0_0 = arith.constant 0 : index
    %0 = vector.load %arg1[%c0, %c0_0] : memref<16x8xf32, #tpu.memory_space<vmem>>, vector<16x8xf32>
    %1 = vector.extract_strided_slice %0 {offsets = [0, 2], sizes = [16, 1], strides = [1, 1]} : vector<16x8xf32> to vector<16x1xf32>
    %c0_1 = arith.constant 0 : index
    %c0_2 = arith.constant 0 : index
    %2 = vector.load %arg2[%c0_1, %c0_2] : memref<8x128xf32, #tpu.memory_space<vmem>>, vector<8x128xf32>
    %3 = vector.extract_strided_slice %0 {offsets = [0, 0], sizes = [16, 1], strides = [1, 1]} : vector<16x8xf32> to vector<16x1xf32>
    %4 = vector.extract_strided_slice %2 {offsets = [0, 0], sizes = [1, 128], strides = [1, 1]} : vector<8x128xf32> to vector<1x128xf32>
    %5 = vector.broadcast %3 : vector<16x1xf32> to vector<16x128xf32>
    %6 = vector.broadcast %4 : vector<1x128xf32> to vector<16x128xf32>
    %7 = arith.mulf %5, %6 : vector<16x128xf32>
    %8 = vector.extract_strided_slice %0 {offsets = [0, 1], sizes = [16, 1], strides = [1, 1]} : vector<16x8xf32> to vector<16x1xf32>
    %9 = vector.extract_strided_slice %2 {offsets = [1, 0], sizes = [1, 128], strides = [1, 1]} : vector<8x128xf32> to vector<1x128xf32>
    %10 = vector.broadcast %8 : vector<16x1xf32> to vector<16x128xf32>
    %11 = vector.broadcast %9 : vector<1x128xf32> to vector<16x128xf32>
    %12 = arith.mulf %10, %11 : vector<16x128xf32>
    %13 = arith.addf %7, %12 : vector<16x128xf32>
    %14 = vector.extract_strided_slice %2 {offsets = [2, 0], sizes = [1, 128], strides = [1, 1]} : vector<8x128xf32> to vector<1x128xf32>
    %15 = vector.broadcast %1 : vector<16x1xf32> to vector<16x128xf32>
    %16 = vector.broadcast %14 : vector<1x128xf32> to vector<16x128xf32>
    %17 = arith.mulf %15, %16 : vector<16x128xf32>
    %18 = arith.addf %13, %17 : vector<16x128xf32>
    %c0_3 = arith.constant 0 : index
    %c0_4 = arith.constant 0 : index
    %c0_5 = arith.constant 0 : index
    %19 = vector.load %arg4[%c0_3, %c0_4, %c0_5] : memref<9x1x128xf32, #tpu.memory_space<vmem>>, vector<1x1x128xf32>
    %20 = vector.shape_cast %19 : vector<1x1x128xf32> to vector<1x128xf32>
    %21 = vector.broadcast %20 : vector<1x128xf32> to vector<16x128xf32>
    %22 = arith.addf %18, %21 : vector<16x128xf32>
    %cst = arith.constant 0.000000e+00 : f32
    %23 = vector.broadcast %cst : f32 to vector<16x128xf32>
    %24 = arith.maximumf %22, %23 : vector<16x128xf32>
    %25 = vector.broadcast %cst : f32 to vector<16x128xf32>
    %26 = arith.subf %22, %25 : vector<16x128xf32>
    %27 = arith.cmpf one, %26, %26 : vector<16x128xf32>
    %28 = vector.broadcast %cst : f32 to vector<16x128xf32>
    %29 = arith.addf %22, %28 : vector<16x128xf32>
    %30 = math.absf %26 : vector<16x128xf32>
    %cst_6 = arith.constant 0.000000e+00 : f32
    %31 = vector.broadcast %cst_6 : f32 to vector<16x128xf32>
    %32 = arith.subf %31, %30 : vector<16x128xf32>
    %33 = math.exp %32 : vector<16x128xf32>
    %34 = math.log1p %33 : vector<16x128xf32>
    %35 = arith.addf %24, %34 : vector<16x128xf32>
    %36 = arith.select %27, %29, %35 : vector<16x128xi1>, vector<16x128xf32>
    %37 = arith.truncf %36 : vector<16x128xf32> to vector<16x128xbf16>
    %c0_7 = arith.constant 0 : index
    %c0_8 = arith.constant 0 : index
    %c0_9 = arith.constant 0 : index
    %38 = vector.load %arg3[%c0_7, %c0_8, %c0_9] : memref<8x128x128xbf16, #tpu.memory_space<vmem>>, vector<1x128x128xbf16>
    %39 = vector.shape_cast %38 : vector<1x128x128xbf16> to vector<128x128xbf16>
    %cst_10 = arith.constant dense<0.000000e+00> : vector<16x128xf32>
    %40 = tpu.matmul %37, %39, %cst_10 {dimension_numbers = #tpu.dot_dimension_numbers<[1], [0], [0], [1], [0, 0, 1, 1], [], []>} : vector<16x128xbf16>, vector<128x128xbf16>, vector<16x128xf32> -> vector<16x128xf32>
    %c1 = arith.constant 1 : index
    %c0_11 = arith.constant 0 : index
    %c0_12 = arith.constant 0 : index
    %41 = vector.load %arg4[%c1, %c0_11, %c0_12] : memref<9x1x128xf32, #tpu.memory_space<vmem>>, vector<1x1x128xf32>
    %42 = vector.shape_cast %41 : vector<1x1x128xf32> to vector<1x128xf32>
    %43 = vector.broadcast %42 : vector<1x128xf32> to vector<16x128xf32>
    %44 = arith.addf %40, %43 : vector<16x128xf32>
    %cst_13 = arith.constant 0.000000e+00 : f32
    %45 = vector.broadcast %cst_13 : f32 to vector<16x128xf32>
    %46 = arith.maximumf %44, %45 : vector<16x128xf32>
    %47 = vector.broadcast %cst_13 : f32 to vector<16x128xf32>
    %48 = arith.subf %44, %47 : vector<16x128xf32>
    %49 = arith.cmpf one, %48, %48 : vector<16x128xf32>
    %50 = vector.broadcast %cst_13 : f32 to vector<16x128xf32>
    %51 = arith.addf %44, %50 : vector<16x128xf32>
    %52 = math.absf %48 : vector<16x128xf32>
    %cst_14 = arith.constant 0.000000e+00 : f32
    %53 = vector.broadcast %cst_14 : f32 to vector<16x128xf32>
    %54 = arith.subf %53, %52 : vector<16x128xf32>
    %55 = math.exp %54 : vector<16x128xf32>
    %56 = math.log1p %55 : vector<16x128xf32>
    %57 = arith.addf %46, %56 : vector<16x128xf32>
    %58 = arith.select %49, %51, %57 : vector<16x128xi1>, vector<16x128xf32>
    %59 = arith.truncf %58 : vector<16x128xf32> to vector<16x128xbf16>
    %c1_15 = arith.constant 1 : index
    %c0_16 = arith.constant 0 : index
    %c0_17 = arith.constant 0 : index
    %60 = vector.load %arg3[%c1_15, %c0_16, %c0_17] : memref<8x128x128xbf16, #tpu.memory_space<vmem>>, vector<1x128x128xbf16>
    %61 = vector.shape_cast %60 : vector<1x128x128xbf16> to vector<128x128xbf16>
    %cst_18 = arith.constant dense<0.000000e+00> : vector<16x128xf32>
    %62 = tpu.matmul %59, %61, %cst_18 {dimension_numbers = #tpu.dot_dimension_numbers<[1], [0], [0], [1], [0, 0, 1, 1], [], []>} : vector<16x128xbf16>, vector<128x128xbf16>, vector<16x128xf32> -> vector<16x128xf32>
    %c2 = arith.constant 2 : index
    %c0_19 = arith.constant 0 : index
    %c0_20 = arith.constant 0 : index
    %63 = vector.load %arg4[%c2, %c0_19, %c0_20] : memref<9x1x128xf32, #tpu.memory_space<vmem>>, vector<1x1x128xf32>
    %64 = vector.shape_cast %63 : vector<1x1x128xf32> to vector<1x128xf32>
    %65 = vector.broadcast %64 : vector<1x128xf32> to vector<16x128xf32>
    %66 = arith.addf %62, %65 : vector<16x128xf32>
    %cst_21 = arith.constant 0.000000e+00 : f32
    %67 = vector.broadcast %cst_21 : f32 to vector<16x128xf32>
    %68 = arith.maximumf %66, %67 : vector<16x128xf32>
    %69 = vector.broadcast %cst_21 : f32 to vector<16x128xf32>
    %70 = arith.subf %66, %69 : vector<16x128xf32>
    %71 = arith.cmpf one, %70, %70 : vector<16x128xf32>
    %72 = vector.broadcast %cst_21 : f32 to vector<16x128xf32>
    %73 = arith.addf %66, %72 : vector<16x128xf32>
    %74 = math.absf %70 : vector<16x128xf32>
    %cst_22 = arith.constant 0.000000e+00 : f32
    %75 = vector.broadcast %cst_22 : f32 to vector<16x128xf32>
    %76 = arith.subf %75, %74 : vector<16x128xf32>
    %77 = math.exp %76 : vector<16x128xf32>
    %78 = math.log1p %77 : vector<16x128xf32>
    %79 = arith.addf %68, %78 : vector<16x128xf32>
    %80 = arith.select %71, %73, %79 : vector<16x128xi1>, vector<16x128xf32>
    %81 = arith.truncf %80 : vector<16x128xf32> to vector<16x128xbf16>
    %c2_23 = arith.constant 2 : index
    %c0_24 = arith.constant 0 : index
    %c0_25 = arith.constant 0 : index
    %82 = vector.load %arg3[%c2_23, %c0_24, %c0_25] : memref<8x128x128xbf16, #tpu.memory_space<vmem>>, vector<1x128x128xbf16>
    %83 = vector.shape_cast %82 : vector<1x128x128xbf16> to vector<128x128xbf16>
    %cst_26 = arith.constant dense<0.000000e+00> : vector<16x128xf32>
    %84 = tpu.matmul %81, %83, %cst_26 {dimension_numbers = #tpu.dot_dimension_numbers<[1], [0], [0], [1], [0, 0, 1, 1], [], []>} : vector<16x128xbf16>, vector<128x128xbf16>, vector<16x128xf32> -> vector<16x128xf32>
    %c3 = arith.constant 3 : index
    %c0_27 = arith.constant 0 : index
    %c0_28 = arith.constant 0 : index
    %85 = vector.load %arg4[%c3, %c0_27, %c0_28] : memref<9x1x128xf32, #tpu.memory_space<vmem>>, vector<1x1x128xf32>
    %86 = vector.shape_cast %85 : vector<1x1x128xf32> to vector<1x128xf32>
    %87 = vector.broadcast %86 : vector<1x128xf32> to vector<16x128xf32>
    %88 = arith.addf %84, %87 : vector<16x128xf32>
    %cst_29 = arith.constant 0.000000e+00 : f32
    %89 = vector.broadcast %cst_29 : f32 to vector<16x128xf32>
    %90 = arith.maximumf %88, %89 : vector<16x128xf32>
    %91 = vector.broadcast %cst_29 : f32 to vector<16x128xf32>
    %92 = arith.subf %88, %91 : vector<16x128xf32>
    %93 = arith.cmpf one, %92, %92 : vector<16x128xf32>
    %94 = vector.broadcast %cst_29 : f32 to vector<16x128xf32>
    %95 = arith.addf %88, %94 : vector<16x128xf32>
    %96 = math.absf %92 : vector<16x128xf32>
    %cst_30 = arith.constant 0.000000e+00 : f32
    %97 = vector.broadcast %cst_30 : f32 to vector<16x128xf32>
    %98 = arith.subf %97, %96 : vector<16x128xf32>
    %99 = math.exp %98 : vector<16x128xf32>
    %100 = math.log1p %99 : vector<16x128xf32>
    %101 = arith.addf %90, %100 : vector<16x128xf32>
    %102 = arith.select %93, %95, %101 : vector<16x128xi1>, vector<16x128xf32>
    %103 = arith.truncf %102 : vector<16x128xf32> to vector<16x128xbf16>
    %c3_31 = arith.constant 3 : index
    %c0_32 = arith.constant 0 : index
    %c0_33 = arith.constant 0 : index
    %104 = vector.load %arg3[%c3_31, %c0_32, %c0_33] : memref<8x128x128xbf16, #tpu.memory_space<vmem>>, vector<1x128x128xbf16>
    %105 = vector.shape_cast %104 : vector<1x128x128xbf16> to vector<128x128xbf16>
    %cst_34 = arith.constant dense<0.000000e+00> : vector<16x128xf32>
    %106 = tpu.matmul %103, %105, %cst_34 {dimension_numbers = #tpu.dot_dimension_numbers<[1], [0], [0], [1], [0, 0, 1, 1], [], []>} : vector<16x128xbf16>, vector<128x128xbf16>, vector<16x128xf32> -> vector<16x128xf32>
    %c4 = arith.constant 4 : index
    %c0_35 = arith.constant 0 : index
    %c0_36 = arith.constant 0 : index
    %107 = vector.load %arg4[%c4, %c0_35, %c0_36] : memref<9x1x128xf32, #tpu.memory_space<vmem>>, vector<1x1x128xf32>
    %108 = vector.shape_cast %107 : vector<1x1x128xf32> to vector<1x128xf32>
    %109 = vector.broadcast %108 : vector<1x128xf32> to vector<16x128xf32>
    %110 = arith.addf %106, %109 : vector<16x128xf32>
    %cst_37 = arith.constant 0.000000e+00 : f32
    %111 = vector.broadcast %cst_37 : f32 to vector<16x128xf32>
    %112 = arith.maximumf %110, %111 : vector<16x128xf32>
    %113 = vector.broadcast %cst_37 : f32 to vector<16x128xf32>
    %114 = arith.subf %110, %113 : vector<16x128xf32>
    %115 = arith.cmpf one, %114, %114 : vector<16x128xf32>
    %116 = vector.broadcast %cst_37 : f32 to vector<16x128xf32>
    %117 = arith.addf %110, %116 : vector<16x128xf32>
    %118 = math.absf %114 : vector<16x128xf32>
    %cst_38 = arith.constant 0.000000e+00 : f32
    %119 = vector.broadcast %cst_38 : f32 to vector<16x128xf32>
    %120 = arith.subf %119, %118 : vector<16x128xf32>
    %121 = math.exp %120 : vector<16x128xf32>
    %122 = math.log1p %121 : vector<16x128xf32>
    %123 = arith.addf %112, %122 : vector<16x128xf32>
    %124 = arith.select %115, %117, %123 : vector<16x128xi1>, vector<16x128xf32>
    %125 = arith.truncf %124 : vector<16x128xf32> to vector<16x128xbf16>
    %c4_39 = arith.constant 4 : index
    %c0_40 = arith.constant 0 : index
    %c0_41 = arith.constant 0 : index
    %126 = vector.load %arg3[%c4_39, %c0_40, %c0_41] : memref<8x128x128xbf16, #tpu.memory_space<vmem>>, vector<1x128x128xbf16>
    %127 = vector.shape_cast %126 : vector<1x128x128xbf16> to vector<128x128xbf16>
    %cst_42 = arith.constant dense<0.000000e+00> : vector<16x128xf32>
    %128 = tpu.matmul %125, %127, %cst_42 {dimension_numbers = #tpu.dot_dimension_numbers<[1], [0], [0], [1], [0, 0, 1, 1], [], []>} : vector<16x128xbf16>, vector<128x128xbf16>, vector<16x128xf32> -> vector<16x128xf32>
    %c5 = arith.constant 5 : index
    %c0_43 = arith.constant 0 : index
    %c0_44 = arith.constant 0 : index
    %129 = vector.load %arg4[%c5, %c0_43, %c0_44] : memref<9x1x128xf32, #tpu.memory_space<vmem>>, vector<1x1x128xf32>
    %130 = vector.shape_cast %129 : vector<1x1x128xf32> to vector<1x128xf32>
    %131 = vector.broadcast %130 : vector<1x128xf32> to vector<16x128xf32>
    %132 = arith.addf %128, %131 : vector<16x128xf32>
    %cst_45 = arith.constant 0.000000e+00 : f32
    %133 = vector.broadcast %cst_45 : f32 to vector<16x128xf32>
    %134 = arith.maximumf %132, %133 : vector<16x128xf32>
    %135 = vector.broadcast %cst_45 : f32 to vector<16x128xf32>
    %136 = arith.subf %132, %135 : vector<16x128xf32>
    %137 = arith.cmpf one, %136, %136 : vector<16x128xf32>
    %138 = vector.broadcast %cst_45 : f32 to vector<16x128xf32>
    %139 = arith.addf %132, %138 : vector<16x128xf32>
    %140 = math.absf %136 : vector<16x128xf32>
    %cst_46 = arith.constant 0.000000e+00 : f32
    %141 = vector.broadcast %cst_46 : f32 to vector<16x128xf32>
    %142 = arith.subf %141, %140 : vector<16x128xf32>
    %143 = math.exp %142 : vector<16x128xf32>
    %144 = math.log1p %143 : vector<16x128xf32>
    %145 = arith.addf %134, %144 : vector<16x128xf32>
    %146 = arith.select %137, %139, %145 : vector<16x128xi1>, vector<16x128xf32>
    %147 = arith.truncf %146 : vector<16x128xf32> to vector<16x128xbf16>
    %c5_47 = arith.constant 5 : index
    %c0_48 = arith.constant 0 : index
    %c0_49 = arith.constant 0 : index
    %148 = vector.load %arg3[%c5_47, %c0_48, %c0_49] : memref<8x128x128xbf16, #tpu.memory_space<vmem>>, vector<1x128x128xbf16>
    %149 = vector.shape_cast %148 : vector<1x128x128xbf16> to vector<128x128xbf16>
    %cst_50 = arith.constant dense<0.000000e+00> : vector<16x128xf32>
    %150 = tpu.matmul %147, %149, %cst_50 {dimension_numbers = #tpu.dot_dimension_numbers<[1], [0], [0], [1], [0, 0, 1, 1], [], []>} : vector<16x128xbf16>, vector<128x128xbf16>, vector<16x128xf32> -> vector<16x128xf32>
    %c6 = arith.constant 6 : index
    %c0_51 = arith.constant 0 : index
    %c0_52 = arith.constant 0 : index
    %151 = vector.load %arg4[%c6, %c0_51, %c0_52] : memref<9x1x128xf32, #tpu.memory_space<vmem>>, vector<1x1x128xf32>
    %152 = vector.shape_cast %151 : vector<1x1x128xf32> to vector<1x128xf32>
    %153 = vector.broadcast %152 : vector<1x128xf32> to vector<16x128xf32>
    %154 = arith.addf %150, %153 : vector<16x128xf32>
    %cst_53 = arith.constant 0.000000e+00 : f32
    %155 = vector.broadcast %cst_53 : f32 to vector<16x128xf32>
    %156 = arith.maximumf %154, %155 : vector<16x128xf32>
    %157 = vector.broadcast %cst_53 : f32 to vector<16x128xf32>
    %158 = arith.subf %154, %157 : vector<16x128xf32>
    %159 = arith.cmpf one, %158, %158 : vector<16x128xf32>
    %160 = vector.broadcast %cst_53 : f32 to vector<16x128xf32>
    %161 = arith.addf %154, %160 : vector<16x128xf32>
    %162 = math.absf %158 : vector<16x128xf32>
    %cst_54 = arith.constant 0.000000e+00 : f32
    %163 = vector.broadcast %cst_54 : f32 to vector<16x128xf32>
    %164 = arith.subf %163, %162 : vector<16x128xf32>
    %165 = math.exp %164 : vector<16x128xf32>
    %166 = math.log1p %165 : vector<16x128xf32>
    %167 = arith.addf %156, %166 : vector<16x128xf32>
    %168 = arith.select %159, %161, %167 : vector<16x128xi1>, vector<16x128xf32>
    %169 = arith.truncf %168 : vector<16x128xf32> to vector<16x128xbf16>
    %c6_55 = arith.constant 6 : index
    %c0_56 = arith.constant 0 : index
    %c0_57 = arith.constant 0 : index
    %170 = vector.load %arg3[%c6_55, %c0_56, %c0_57] : memref<8x128x128xbf16, #tpu.memory_space<vmem>>, vector<1x128x128xbf16>
    %171 = vector.shape_cast %170 : vector<1x128x128xbf16> to vector<128x128xbf16>
    %cst_58 = arith.constant dense<0.000000e+00> : vector<16x128xf32>
    %172 = tpu.matmul %169, %171, %cst_58 {dimension_numbers = #tpu.dot_dimension_numbers<[1], [0], [0], [1], [0, 0, 1, 1], [], []>} : vector<16x128xbf16>, vector<128x128xbf16>, vector<16x128xf32> -> vector<16x128xf32>
    %c7 = arith.constant 7 : index
    %c0_59 = arith.constant 0 : index
    %c0_60 = arith.constant 0 : index
    %173 = vector.load %arg4[%c7, %c0_59, %c0_60] : memref<9x1x128xf32, #tpu.memory_space<vmem>>, vector<1x1x128xf32>
    %174 = vector.shape_cast %173 : vector<1x1x128xf32> to vector<1x128xf32>
    %175 = vector.broadcast %174 : vector<1x128xf32> to vector<16x128xf32>
    %176 = arith.addf %172, %175 : vector<16x128xf32>
    %cst_61 = arith.constant 0.000000e+00 : f32
    %177 = vector.broadcast %cst_61 : f32 to vector<16x128xf32>
    %178 = arith.maximumf %176, %177 : vector<16x128xf32>
    %179 = vector.broadcast %cst_61 : f32 to vector<16x128xf32>
    %180 = arith.subf %176, %179 : vector<16x128xf32>
    %181 = arith.cmpf one, %180, %180 : vector<16x128xf32>
    %182 = vector.broadcast %cst_61 : f32 to vector<16x128xf32>
    %183 = arith.addf %176, %182 : vector<16x128xf32>
    %184 = math.absf %180 : vector<16x128xf32>
    %cst_62 = arith.constant 0.000000e+00 : f32
    %185 = vector.broadcast %cst_62 : f32 to vector<16x128xf32>
    %186 = arith.subf %185, %184 : vector<16x128xf32>
    %187 = math.exp %186 : vector<16x128xf32>
    %188 = math.log1p %187 : vector<16x128xf32>
    %189 = arith.addf %178, %188 : vector<16x128xf32>
    %190 = arith.select %181, %183, %189 : vector<16x128xi1>, vector<16x128xf32>
    %191 = arith.truncf %190 : vector<16x128xf32> to vector<16x128xbf16>
    %c7_63 = arith.constant 7 : index
    %c0_64 = arith.constant 0 : index
    %c0_65 = arith.constant 0 : index
    %192 = vector.load %arg3[%c7_63, %c0_64, %c0_65] : memref<8x128x128xbf16, #tpu.memory_space<vmem>>, vector<1x128x128xbf16>
    %193 = vector.shape_cast %192 : vector<1x128x128xbf16> to vector<128x128xbf16>
    %cst_66 = arith.constant dense<0.000000e+00> : vector<16x128xf32>
    %194 = tpu.matmul %191, %193, %cst_66 {dimension_numbers = #tpu.dot_dimension_numbers<[1], [0], [0], [1], [0, 0, 1, 1], [], []>} : vector<16x128xbf16>, vector<128x128xbf16>, vector<16x128xf32> -> vector<16x128xf32>
    %c8 = arith.constant 8 : index
    %c0_67 = arith.constant 0 : index
    %c0_68 = arith.constant 0 : index
    %195 = vector.load %arg4[%c8, %c0_67, %c0_68] : memref<9x1x128xf32, #tpu.memory_space<vmem>>, vector<1x1x128xf32>
    %196 = vector.shape_cast %195 : vector<1x1x128xf32> to vector<1x128xf32>
    %197 = vector.broadcast %196 : vector<1x128xf32> to vector<16x128xf32>
    %198 = arith.addf %194, %197 : vector<16x128xf32>
    %199 = tpu.reciprocal %1 {approx = true} : vector<16x1xf32> -> vector<16x1xf32>
    %200 = vector.broadcast %199 : vector<16x1xf32> to vector<16x128xf32>
    %201 = arith.mulf %198, %200 : vector<16x128xf32>
    %202 = arith.truncf %201 : vector<16x128xf32> to vector<16x128xbf16>
    %c0_69 = arith.constant 0 : index
    %c0_70 = arith.constant 0 : index
    %203 = vector.load %arg5[%c0_69, %c0_70] : memref<16x128xbf16, #tpu.memory_space<vmem>>, vector<16x128xbf16>
    tpu.vector_store %arg5[%c0_69, %c0_70], %202 {strides = array<i32>} : memref<16x128xbf16, #tpu.memory_space<vmem>>, vector<16x128xbf16>,
    return
  }
  func.func @transform_0(%arg0: i32) -> (i32, i32) {
    %c0_i32 = arith.constant 0 : i32
    %c0_i32_0 = arith.constant 0 : i32
    return %arg0, %c0_i32 : i32, i32
  }
  func.func @transform_1(%arg0: i32) -> (i32, i32) {
    %c0_i32 = arith.constant 0 : i32
    %c0_i32_0 = arith.constant 0 : i32
    %c0_i32_1 = arith.constant 0 : i32
    return %c0_i32, %c0_i32_0 : i32, i32
  }
  func.func @transform_2(%arg0: i32) -> (i32, i32, i32) {
    %c0_i32 = arith.constant 0 : i32
    %c0_i32_0 = arith.constant 0 : i32
    %c0_i32_1 = arith.constant 0 : i32
    %c0_i32_2 = arith.constant 0 : i32
    return %c0_i32, %c0_i32_0, %c0_i32_1 : i32, i32, i32
  }
  func.func @transform_3(%arg0: i32) -> (i32, i32, i32) {
    %c0_i32 = arith.constant 0 : i32
    %c0_i32_0 = arith.constant 0 : i32
    %c0_i32_1 = arith.constant 0 : i32
    %c0_i32_2 = arith.constant 0 : i32
    return %c0_i32, %c0_i32_0, %c0_i32_1 : i32, i32, i32
  }
  func.func @transform_4(%arg0: i32) -> (i32, i32) {
    %c0_i32 = arith.constant 0 : i32
    %c0_i32_0 = arith.constant 0 : i32
    return %arg0, %c0_i32 : i32, i32
  }
}

</mosaic_0001>

<llo_original>
// kernel: _scorenet_pallas.1
$region0: #{_scorenet_pallas.1}
  #allocation0 [shape = 'u32[]', space=smem, size = 0x4, offset = 0x4, fixed_abs, tag = 'smem constant byte address 0x4 - core index']
  #allocation1 [shape = 'u32[144,128]{1,0:T(1,128)}', space=vmem, size = 0x12000, scoped, tag = 'internal scratch']
  %s0 = inlined_call_operand.vmem [shape: f32[16,8], index: 0, kind: input, shape index: {}]
  %s1 = inlined_call_operand.vmem [shape: f32[8,128], index: 1, kind: input, shape index: {}]
  %s2 = inlined_call_operand.hbm [shape: bf16[8,128,128], index: 2, kind: input, shape index: {}]
  %s3 = inlined_call_operand.vmem [shape: f32[9,1,128], index: 3, kind: input, shape index: {}]
  %s4 = inlined_call_operand.hbm [shape: bf16[16,128], index: 4, kind: output, shape index: {}]
  %s5 = sld [smem:[#allocation0]]
  $region30: #{_scorenet_pallas.1} parent=0
    _
  %s7 = ssub.s32 1, %s5
  %s8 = scalar_select 0, %s7, %s5
  $region1: #{_scorenet_pallas.1} parent=0
    #allocation2 [shape = 'u8[262144]{0}', space=vmem, size = 0x40000, scoped, tag = 'input window, operand 2, single buffered']
    #allocation3 [shape = 's32[1]{0}', space=sflag, size = 0x4, scoped, tag = 'scoped memory for _scorenet_pallas.1']
    #allocation4 [shape = 's32[1]{0}', space=sflag, size = 0x4, scoped, tag = 'scoped memory for _scorenet_pallas.1']
    #allocation5 [shape = 'u8[4096]{0}', space=vmem, size = 0x1000, scoped, tag = 'output window, operand 0, single buffered']
    %9 = vsyncpa [#allocation3], 0
    %10 = vsyncpa [#allocation4], 0
    // Predicated region
    $region2: #{_scorenet_pallas.1} parent=1 // pred_check
      _
    $region3: #{_scorenet_pallas.1} parent=1 // pred_check_branch
      %12 = sbr.rel (0) target = $region5
    $region4: #{_scorenet_pallas.1} parent=1 // pred_region
      _
    $region5: #{_scorenet_pallas.1} parent=1 // pred_fallthru
      _
    // Predicated region
    $region6: #{_scorenet_pallas.1} parent=1 // pred_check
      _
    $region7: #{_scorenet_pallas.1} parent=1 // pred_check_branch
      %14 = sbr.rel (0) target = $region9
    $region8: #{_scorenet_pallas.1} parent=1 // pred_region
      _
    $region9: #{_scorenet_pallas.1} parent=1 // pred_fallthru
      _
    // Predicated region
    $region10: #{_scorenet_pallas.1} parent=1 // pred_check
      _
    $region11: #{_scorenet_pallas.1} parent=1 // pred_check_branch
      %16 = sbr.rel (0) target = $region13
    $region12: #{_scorenet_pallas.1} parent=1 // pred_region
      %s18 = ssub.s32 8192, 8192
      %19 = vsyncadd [#allocation3], %s18
      %s20 = sshll.u32 [#allocation2], 4
      %s21 = int_to_ptr.vmem [resolvable:$true] %s20
      %26 = dma.hbm_to_vmem [thread:$0]  %s2, 8192, %s21, [#allocation3], 64, 64, 4
    $region13: #{_scorenet_pallas.1} parent=1 // pred_fallthru
      _
    // Predicated region
    $region14: #{_scorenet_pallas.1} parent=1 // pred_check
      _
    $region15: #{_scorenet_pallas.1} parent=1 // pred_check_branch
      %28 = sbr.rel (0) target = $region17
    $region16: #{_scorenet_pallas.1} parent=1 // pred_region
      _
    $region17: #{_scorenet_pallas.1} parent=1 // pred_fallthru
      _
    // Predicated region
    $region18: #{_scorenet_pallas.1} parent=1 // pred_check
      _
    $region19: #{_scorenet_pallas.1} parent=1 // pred_check_branch
      %30 = sbr.rel (0) target = $region21
    $region20: #{_scorenet_pallas.1} parent=1 // pred_region
      %31 = dma.done [#allocation3], 8192
    $region21: #{_scorenet_pallas.1} parent=1 // pred_fallthru
      _
    %v33 = vld [vmem:[%s0] sm:$0xff]
    %v34 = vld [vmem:[%s0 + $0x8] sm:$0xff]
    %v35 = vld [vmem:[%s1] sm:$0xff]
    %37 = vset.pattern.permute.xlu0 0
    %38 = vperm.xlu0 %37, %v33
    %v39 = vpop.permute.xlu0 %38
    %42 = vset.pattern.permute.xlu0 0
    %43 = vperm.xlu0 %42, %v34
    %v44 = vpop.permute.xlu0 %43
    %v46 = vlaneseq
    %v47 = vshrl.u32 %v46, 7
    %v48 = vsub.s32 0, %v47
    %v49 = vrot.slane %v35, %v48
    %v50 = vmul.f32 %v39, %v49
    %v51 = vmul.f32 %v44, %v49
    %52 = vset.pattern.permute.xlu0 1
    %53 = vperm.xlu0 %52, %v33
    %v54 = vpop.permute.xlu0 %53
    %56 = vset.pattern.permute.xlu0 1
    %57 = vperm.xlu0 %56, %v34
    %v58 = vpop.permute.xlu0 %57
    %v60 = vlaneseq
    %v61 = vshrl.u32 %v60, 7
    %v62 = vsub.s32 1, %v61
    %v63 = vrot.slane %v35, %v62
    %v64 = vmul.f32 %v54, %v63
    %v65 = vmul.f32 %v58, %v63
    %v66 = vadd.f32 %v50, %v64
    %v67 = vadd.f32 %v51, %v65
    %68 = vset.pattern.permute.xlu0 2
    %69 = vperm.xlu0 %68, %v33
    %v70 = vpop.permute.xlu0 %69
    %72 = vset.pattern.permute.xlu0 2
    %73 = vperm.xlu0 %72, %v34
    %v74 = vpop.permute.xlu0 %73
    %v76 = vlaneseq
    %v77 = vshrl.u32 %v76, 7
    %v78 = vsub.s32 2, %v77
    %v79 = vrot.slane %v35, %v78
    %v80 = vmul.f32 %v70, %v79
    %v81 = vmul.f32 %v74, %v79
    %v82 = vadd.f32 %v66, %v80
    %v83 = vadd.f32 %v67, %v81
    %v84 = vld [vmem:[%s3] sm:$0x1]
    %v86 = vlaneseq
    %v87 = vshrl.u32 %v86, 7
    %v88 = vsub.s32 0, %v87
    %v89 = vrot.slane %v84, %v88
    %v91 = vadd.f32 %v82, %v89
    %v92 = vadd.f32 %v83, %v89
    %v93 = vmax.f32 %v91, 0.0
    %v94 = vmax.f32 %v92, 0.0
    %vm95 = vcmp.ne.f32.partialorder %v91, %v91
    %vm96 = vcmp.ne.f32.partialorder %v92, %v92
    %v97 = vadd.f32 %v91, 0.0
    %v98 = vadd.f32 %v92, 0.0
    %v99 = vand.u32 2147483647, %v91
    %v100 = vand.u32 2147483647, %v92
    %v101 = vsub.f32 0.0, %v99
    %v102 = vsub.f32 0.0, %v100
    %v103 = vmul.f32 %v101, 1.442695
    %v104 = vpow.pop %v103
    %v105 = vmul.f32 %v102, 1.442695
    %v106 = vpow.pop %v105
    %v107 = vadd.f32 %v104, 1.0
    %v108 = vlog2.pop %v107
    %v109 = vmul.f32 %v108, 0.6931472
    %v110 = vmul.f32 -0.5, %v104
    %v111 = vadd.f32 %v110, 1.0
    %v112 = vmul.f32 %v111, %v104
    %v113 = vand.u32 2147483647, %v104
    %vm114 = vcmp.lt.f32.partialorder %v113, 0.0004427343
    %v115 = vsel %vm114, %v112, %v109
    %v116 = vadd.f32 %v106, 1.0
    %v117 = vlog2.pop %v116
    %v118 = vmul.f32 %v117, 0.6931472
    %v119 = vmul.f32 -0.5, %v106
    %v120 = vadd.f32 %v119, 1.0
    %v121 = vmul.f32 %v120, %v106
    %v122 = vand.u32 2147483647, %v106
    %vm123 = vcmp.lt.f32.partialorder %v122, 0.0004427343
    %v124 = vsel %vm123, %v121, %v118
    %v125 = vadd.f32 %v93, %v115
    %v126 = vadd.f32 %v94, %v124
    %v127 = vsel %vm95, %v97, %v125
    %v128 = vsel %vm96, %v98, %v126
    %v129 = vpack.c.bf16 %v128, %v127
    %v130 = vld [vmem:[#allocation2] sm:$0xf]
    %v131 = vld [vmem:[#allocation2 + $0x4] sm:$0xf]
    %v132 = vld [vmem:[#allocation2 + $0x8] sm:$0xf]
    %v133 = vld [vmem:[#allocation2 + $0xc] sm:$0xf]
    %v134 = vld [vmem:[#allocation2 + $0x10] sm:$0xf]
    %v135 = vld [vmem:[#allocation2 + $0x14] sm:$0xf]
    %v136 = vld [vmem:[#allocation2 + $0x18] sm:$0xf]
    %v137 = vld [vmem:[#allocation2 + $0x1c] sm:$0xf]
    %v138 = vld [vmem:[#allocation2 + $0x20] sm:$0xf]
    %v139 = vld [vmem:[#allocation2 + $0x24] sm:$0xf]
    %v140 = vld [vmem:[#allocation2 + $0x28] sm:$0xf]
    %v141 = vld [vmem:[#allocation2 + $0x2c] sm:$0xf]
    %v142 = vld [vmem:[#allocation2 + $0x30] sm:$0xf]
    %v143 = vld [vmem:[#allocation2 + $0x34] sm:$0xf]
    %v144 = vld [vmem:[#allocation2 + $0x38] sm:$0xf]
    %v145 = vld [vmem:[#allocation2 + $0x3c] sm:$0xf]
    %s146 = scalar_lea.vmem %s3, 1
    %v147 = vld [vmem:[%s146] sm:$0x1]
    %v149 = vlaneseq
    %v150 = vshrl.u32 %v149, 7
    %v151 = vsub.s32 0, %v150
    %v152 = vrot.slane %v147, %v151
    %v170 = vunpack.c.l.b16 %v130
    %v171 = vunpack.c.l.b16 %v131
    %v172 = vunpack.c.l.b16 %v132
    %v173 = vunpack.c.l.b16 %v133
    %v174 = vunpack.c.l.b16 %v134
    %v175 = vunpack.c.l.b16 %v135
    %v176 = vunpack.c.l.b16 %v136
    %v177 = vunpack.c.l.b16 %v137
    %v178 = vunpack.c.l.b16 %v138
    %v179 = vunpack.c.l.b16 %v139
    %v180 = vunpack.c.l.b16 %v140
    %v181 = vunpack.c.l.b16 %v141
    %v182 = vunpack.c.l.b16 %v142
    %v183 = vunpack.c.l.b16 %v143
    %v184 = vunpack.c.l.b16 %v144
    %v185 = vunpack.c.l.b16 %v145
    %v186 = vpack.c.b16 %v171, %v170
    %v187 = vpack.c.b16 %v173, %v172
    %v188 = vpack.c.b16 %v175, %v174
    %v189 = vpack.c.b16 %v177, %v176
    %v190 = vpack.c.b16 %v179, %v178
    %v191 = vpack.c.b16 %v181, %v180
    %v192 = vpack.c.b16 %v183, %v182
    %v193 = vpack.c.b16 %v185, %v184
    %202 = vmatprep.subr.bf16.mxu0 0
    %203 = vmatpush1.bf16.msra.mxu0 %v186
    %204 = vmatprep.subr.bf16.mxu0 0
    %205 = vmatpush1.bf16.msra.mxu0 %v187
    %206 = vmatprep.subr.bf16.mxu0 0
    %207 = vmatpush1.bf16.msra.mxu0 %v188
    %208 = vmatprep.subr.bf16.mxu0 0
    %209 = vmatpush1.bf16.msra.mxu0 %v189
    %210 = vmatprep.subr.bf16.mxu0 0
    %211 = vmatpush1.bf16.msra.mxu0 %v190
    %212 = vmatprep.subr.bf16.mxu0 0
    %213 = vmatpush1.bf16.msra.mxu0 %v191
    %214 = vmatprep.subr.bf16.mxu0 0
    %215 = vmatpush1.bf16.msra.mxu0 %v192
    %216 = vmatprep.subr.bf16.mxu0 0
    %217 = vmatpush1.bf16.msra.mxu0 %v193
    %218 = vmatprep.subr.bf16.mxu0 0
    %219 = vmatpush1.bf16.msra.mxu0 0
    %220 = vmatprep.subr.bf16.mxu0 0
    %221 = vmatpush1.bf16.msra.mxu0 0
    %222 = vmatprep.subr.bf16.mxu0 0
    %223 = vmatpush1.bf16.msra.mxu0 0
    %224 = vmatprep.subr.bf16.mxu0 0
    %225 = vmatpush1.bf16.msra.mxu0 0
    %226 = vmatprep.subr.bf16.mxu0 0
    %227 = vmatpush1.bf16.msra.mxu0 0
    %228 = vmatprep.subr.bf16.mxu0 0
    %229 = vmatpush1.bf16.msra.mxu0 0
    %230 = vmatprep.subr.bf16.mxu0 0
    %231 = vmatpush1.bf16.msra.mxu0 0
    %232 = vmatprep.subr.bf16.mxu0 0
    %233 = vmatpush1.bf16.msra.mxu0 0
    %234 = vmatprep.mubr.bf16.mxu0 0
    %235 = vmatmul.mubr.bf16.gmra.mrb[0].mxu0 %v129
    %v236 = vpop.f32.mrb[0].mxu0
    %v237 = vadd.f32 %v152, %v236
    %v238 = vpop.f32.mrb[0].mxu0
    %v239 = vpop.f32.mrb[0].mxu0
    %v240 = vadd.f32 %v152, %v239
    %v241 = vpop.f32.mrb[0].mxu0
    %242 = vdwg.mxu0
    %v243 = vmax.f32 %v237, 0.0
    %v244 = vmax.f32 %v240, 0.0
    %vm245 = vcmp.ne.f32.partialorder %v237, %v237
    %vm246 = vcmp.ne.f32.partialorder %v240, %v240
    %v247 = vadd.f32 %v237, 0.0
    %v248 = vadd.f32 %v240, 0.0
    %v249 = vand.u32 2147483647, %v237
    %v250 = vand.u32 2147483647, %v240
    %v251 = vsub.f32 0.0, %v249
    %v252 = vsub.f32 0.0, %v250
    %v253 = vmul.f32 %v251, 1.442695
    %v254 = vpow.pop %v253
    %v255 = vmul.f32 %v252, 1.442695
    %v256 = vpow.pop %v255
    %v257 = vadd.f32 %v254, 1.0
    %v258 = vlog2.pop %v257
    %v259 = vmul.f32 %v258, 0.6931472
    %v260 = vmul.f32 -0.5, %v254
    %v261 = vadd.f32 %v260, 1.0
    %v262 = vmul.f32 %v261, %v254
    %v263 = vand.u32 2147483647, %v254
    %vm264 = vcmp.lt.f32.partialorder %v263, 0.0004427343
    %v265 = vsel %vm264, %v262, %v259
    %v266 = vadd.f32 %v256, 1.0
    %v267 = vlog2.pop %v266
    %v268 = vmul.f32 %v267, 0.6931472
    %v269 = vmul.f32 -0.5, %v256
    %v270 = vadd.f32 %v269, 1.0
    %v271 = vmul.f32 %v270, %v256
    %v272 = vand.u32 2147483647, %v256
    %vm273 = vcmp.lt.f32.partialorder %v272, 0.0004427343
    %v274 = vsel %vm273, %v271, %v268
    %v275 = vadd.f32 %v243, %v265
    %v276 = vadd.f32 %v244, %v274
    %v277 = vsel %vm245, %v247, %v275
    %v278 = vsel %vm246, %v248, %v276
    %v279 = vpack.c.bf16 %v278, %v277
    %s280 = scalar_lea.vmem [#allocation2], 64
    %v281 = vld [vmem:[%s280] sm:$0xf]
    %v282 = vld [vmem:[%s280 + $0x4] sm:$0xf]
    %v283 = vld [vmem:[%s280 + $0x8] sm:$0xf]
    %v284 = vld [vmem:[%s280 + $0xc] sm:$0xf]
    %v285 = vld [vmem:[%s280 + $0x10] sm:$0xf]
    %v286 = vld [vmem:[%s280 + $0x14] sm:$0xf]
    %v287 = vld [vmem:[%s280 + $0x18] sm:$0xf]
    %v288 = vld [vmem:[%s280 + $0x1c] sm:$0xf]
    %v289 = vld [vmem:[%s280 + $0x20] sm:$0xf]
    %v290 = vld [vmem:[%s280 + $0x24] sm:$0xf]
    %v291 = vld [vmem:[%s280 + $0x28] sm:$0xf]
    %v292 = vld [vmem:[%s280 + $0x2c] sm:$0xf]
    %v293 = vld [vmem:[%s280 + $0x30] sm:$0xf]
    %v294 = vld [vmem:[%s280 + $0x34] sm:$0xf]
    %v295 = vld [vmem:[%s280 + $0x38] sm:$0xf]
    %v296 = vld [vmem:[%s280 + $0x3c] sm:$0xf]
    %s297 = scalar_lea.vmem %s3, 2
    %v298 = vld [vmem:[%s297] sm:$0x1]
    %v300 = vlaneseq
    %v301 = vshrl.u32 %v300, 7
    %v302 = vsub.s32 0, %v301
    %v303 = vrot.slane %v298, %v302
    %v321 = vunpack.c.l.b16 %v281
    %v322 = vunpack.c.l.b16 %v282
    %v323 = vunpack.c.l.b16 %v283
    %v324 = vunpack.c.l.b16 %v284
    %v325 = vunpack.c.l.b16 %v285
    %v326 = vunpack.c.l.b16 %v286
    %v327 = vunpack.c.l.b16 %v287
    %v328 = vunpack.c.l.b16 %v288
    %v329 = vunpack.c.l.b16 %v289
    %v330 = vunpack.c.l.b16 %v290
    %v331 = vunpack.c.l.b16 %v291
    %v332 = vunpack.c.l.b16 %v292
    %v333 = vunpack.c.l.b16 %v293
    %v334 = vunpack.c.l.b16 %v294
    %v335 = vunpack.c.l.b16 %v295
    %v336 = vunpack.c.l.b16 %v296
    %v337 = vpack.c.b16 %v322, %v321
    %v338 = vpack.c.b16 %v324, %v323
    %v339 = vpack.c.b16 %v326, %v325
    %v340 = vpack.c.b16 %v328, %v327
    %v341 = vpack.c.b16 %v330, %v329
    %v342 = vpack.c.b16 %v332, %v331
    %v343 = vpack.c.b16 %v334, %v333
    %v344 = vpack.c.b16 %v336, %v335
    %353 = vmatprep.subr.bf16.mxu0 0
    %354 = vmatpush1.bf16.msra.mxu0 %v337
    %355 = vmatprep.subr.bf16.mxu0 0
    %356 = vmatpush1.bf16.msra.mxu0 %v338
    %357 = vmatprep.subr.bf16.mxu0 0
    %358 = vmatpush1.bf16.msra.mxu0 %v339
    %359 = vmatprep.subr.bf16.mxu0 0
    %360 = vmatpush1.bf16.msra.mxu0 %v340
    %361 = vmatprep.subr.bf16.mxu0 0
    %362 = vmatpush1.bf16.msra.mxu0 %v341
    %363 = vmatprep.subr.bf16.mxu0 0
    %364 = vmatpush1.bf16.msra.mxu0 %v342
    %365 = vmatprep.subr.bf16.mxu0 0
    %366 = vmatpush1.bf16.msra.mxu0 %v343
    %367 = vmatprep.subr.bf16.mxu0 0
    %368 = vmatpush1.bf16.msra.mxu0 %v344
    %369 = vmatprep.subr.bf16.mxu0 0
    %370 = vmatpush1.bf16.msra.mxu0 0
    %371 = vmatprep.subr.bf16.mxu0 0
    %372 = vmatpush1.bf16.msra.mxu0 0
    %373 = vmatprep.subr.bf16.mxu0 0
    %374 = vmatpush1.bf16.msra.mxu0 0
    %375 = vmatprep.subr.bf16.mxu0 0
    %376 = vmatpush1.bf16.msra.mxu0 0
    %377 = vmatprep.subr.bf16.mxu0 0
    %378 = vmatpush1.bf16.msra.mxu0 0
    %379 = vmatprep.subr.bf16.mxu0 0
    %380 = vmatpush1.bf16.msra.mxu0 0
    %381 = vmatprep.subr.bf16.mxu0 0
    %382 = vmatpush1.bf16.msra.mxu0 0
    %383 = vmatprep.subr.bf16.mxu0 0
    %384 = vmatpush1.bf16.msra.mxu0 0
    %385 = vmatprep.mubr.bf16.mxu0 0
    %386 = vmatmul.mubr.bf16.gmra.mrb[0].mxu0 %v279
    %v387 = vpop.f32.mrb[0].mxu0
    %v388 = vadd.f32 %v303, %v387
    %v389 = vpop.f32.mrb[0].mxu0
    %v390 = vpop.f32.mrb[0].mxu0
    %v391 = vadd.f32 %v303, %v390
    %v392 = vpop.f32.mrb[0].mxu0
    %393 = vdwg.mxu0
    %v394 = vmax.f32 %v388, 0.0
    %v395 = vmax.f32 %v391, 0.0
    %vm396 = vcmp.ne.f32.partialorder %v388, %v388
    %vm397 = vcmp.ne.f32.partialorder %v391, %v391
    %v398 = vadd.f32 %v388, 0.0
    %v399 = vadd.f32 %v391, 0.0
    %v400 = vand.u32 2147483647, %v388
    %v401 = vand.u32 2147483647, %v391
    %v402 = vsub.f32 0.0, %v400
    %v403 = vsub.f32 0.0, %v401
    %v404 = vmul.f32 %v402, 1.442695
    %v405 = vpow.pop %v404
    %v406 = vmul.f32 %v403, 1.442695
    %v407 = vpow.pop %v406
    %v408 = vadd.f32 %v405, 1.0
    %v409 = vlog2.pop %v408
    %v410 = vmul.f32 %v409, 0.6931472
    %v411 = vmul.f32 -0.5, %v405
    %v412 = vadd.f32 %v411, 1.0
    %v413 = vmul.f32 %v412, %v405
    %v414 = vand.u32 2147483647, %v405
    %vm415 = vcmp.lt.f32.partialorder %v414, 0.0004427343
    %v416 = vsel %vm415, %v413, %v410
    %v417 = vadd.f32 %v407, 1.0
    %v418 = vlog2.pop %v417
    %v419 = vmul.f32 %v418, 0.6931472
    %v420 = vmul.f32 -0.5, %v407
    %v421 = vadd.f32 %v420, 1.0
    %v422 = vmul.f32 %v421, %v407
    %v423 = vand.u32 2147483647, %v407
    %vm424 = vcmp.lt.f32.partialorder %v423, 0.0004427343
    %v425 = vsel %vm424, %v422, %v419
    %v426 = vadd.f32 %v394, %v416
    %v427 = vadd.f32 %v395, %v425
    %v428 = vsel %vm396, %v398, %v426
    %v429 = vsel %vm397, %v399, %v427
    %v430 = vpack.c.bf16 %v429, %v428
    %s431 = scalar_lea.vmem [#allocation2], 128
    %v432 = vld [vmem:[%s431] sm:$0xf]
    %v433 = vld [vmem:[%s431 + $0x4] sm:$0xf]
    %v434 = vld [vmem:[%s431 + $0x8] sm:$0xf]
    %v435 = vld [vmem:[%s431 + $0xc] sm:$0xf]
    %v436 = vld [vmem:[%s431 + $0x10] sm:$0xf]
    %v437 = vld [vmem:[%s431 + $0x14] sm:$0xf]
    %v438 = vld [vmem:[%s431 + $0x18] sm:$0xf]
    %v439 = vld [vmem:[%s431 + $0x1c] sm:$0xf]
    %v440 = vld [vmem:[%s431 + $0x20] sm:$0xf]
    %v441 = vld [vmem:[%s431 + $0x24] sm:$0xf]
    %v442 = vld [vmem:[%s431 + $0x28] sm:$0xf]
    %v443 = vld [vmem:[%s431 + $0x2c] sm:$0xf]
    %v444 = vld [vmem:[%s431 + $0x30] sm:$0xf]
    %v445 = vld [vmem:[%s431 + $0x34] sm:$0xf]
    %v446 = vld [vmem:[%s431 + $0x38] sm:$0xf]
    %v447 = vld [vmem:[%s431 + $0x3c] sm:$0xf]
    %s448 = scalar_lea.vmem %s3, 3
    %v449 = vld [vmem:[%s448] sm:$0x1]
    %v451 = vlaneseq
    %v452 = vshrl.u32 %v451, 7
    %v453 = vsub.s32 0, %v452
    %v454 = vrot.slane %v449, %v453
    %v472 = vunpack.c.l.b16 %v432
    %v473 = vunpack.c.l.b16 %v433
    %v474 = vunpack.c.l.b16 %v434
    %v475 = vunpack.c.l.b16 %v435
    %v476 = vunpack.c.l.b16 %v436
    %v477 = vunpack.c.l.b16 %v437
    %v478 = vunpack.c.l.b16 %v438
    %v479 = vunpack.c.l.b16 %v439
    %v480 = vunpack.c.l.b16 %v440
    %v481 = vunpack.c.l.b16 %v441
    %v482 = vunpack.c.l.b16 %v442
    %v483 = vunpack.c.l.b16 %v443
    %v484 = vunpack.c.l.b16 %v444
    %v485 = vunpack.c.l.b16 %v445
    %v486 = vunpack.c.l.b16 %v446
    %v487 = vunpack.c.l.b16 %v447
    %v488 = vpack.c.b16 %v473, %v472
    %v489 = vpack.c.b16 %v475, %v474
    %v490 = vpack.c.b16 %v477, %v476
    %v491 = vpack.c.b16 %v479, %v478
    %v492 = vpack.c.b16 %v481, %v480
    %v493 = vpack.c.b16 %v483, %v482
    %v494 = vpack.c.b16 %v485, %v484
    %v495 = vpack.c.b16 %v487, %v486
    %504 = vmatprep.subr.bf16.mxu0 0
    %505 = vmatpush1.bf16.msra.mxu0 %v488
    %506 = vmatprep.subr.bf16.mxu0 0
    %507 = vmatpush1.bf16.msra.mxu0 %v489
    %508 = vmatprep.subr.bf16.mxu0 0
    %509 = vmatpush1.bf16.msra.mxu0 %v490
    %510 = vmatprep.subr.bf16.mxu0 0
    %511 = vmatpush1.bf16.msra.mxu0 %v491
    %512 = vmatprep.subr.bf16.mxu0 0
    %513 = vmatpush1.bf16.msra.mxu0 %v492
    %514 = vmatprep.subr.bf16.mxu0 0
    %515 = vmatpush1.bf16.msra.mxu0 %v493
    %516 = vmatprep.subr.bf16.mxu0 0
    %517 = vmatpush1.bf16.msra.mxu0 %v494
    %518 = vmatprep.subr.bf16.mxu0 0
    %519 = vmatpush1.bf16.msra.mxu0 %v495
    %520 = vmatprep.subr.bf16.mxu0 0
    %521 = vmatpush1.bf16.msra.mxu0 0
    %522 = vmatprep.subr.bf16.mxu0 0
    %523 = vmatpush1.bf16.msra.mxu0 0
    %524 = vmatprep.subr.bf16.mxu0 0
    %525 = vmatpush1.bf16.msra.mxu0 0
    %526 = vmatprep.subr.bf16.mxu0 0
    %527 = vmatpush1.bf16.msra.mxu0 0
    %528 = vmatprep.subr.bf16.mxu0 0
    %529 = vmatpush1.bf16.msra.mxu0 0
    %530 = vmatprep.subr.bf16.mxu0 0
    %531 = vmatpush1.bf16.msra.mxu0 0
    %532 = vmatprep.subr.bf16.mxu0 0
    %533 = vmatpush1.bf16.msra.mxu0 0
    %534 = vmatprep.subr.bf16.mxu0 0
    %535 = vmatpush1.bf16.msra.mxu0 0
    %536 = vmatprep.mubr.bf16.mxu0 0
    %537 = vmatmul.mubr.bf16.gmra.mrb[0].mxu0 %v430
    %v538 = vpop.f32.mrb[0].mxu0
    %v539 = vadd.f32 %v454, %v538
    %v540 = vpop.f32.mrb[0].mxu0
    %v541 = vpop.f32.mrb[0].mxu0
    %v542 = vadd.f32 %v454, %v541
    %v543 = vpop.f32.mrb[0].mxu0
    %544 = vdwg.mxu0
    %v545 = vmax.f32 %v539, 0.0
    %v546 = vmax.f32 %v542, 0.0
    %vm547 = vcmp.ne.f32.partialorder %v539, %v539
    %vm548 = vcmp.ne.f32.partialorder %v542, %v542
    %v549 = vadd.f32 %v539, 0.0
    %v550 = vadd.f32 %v542, 0.0
    %v551 = vand.u32 2147483647, %v539
    %v552 = vand.u32 2147483647, %v542
    %v553 = vsub.f32 0.0, %v551
    %v554 = vsub.f32 0.0, %v552
    %v555 = vmul.f32 %v553, 1.442695
    %v556 = vpow.pop %v555
    %v557 = vmul.f32 %v554, 1.442695
    %v558 = vpow.pop %v557
    %v559 = vadd.f32 %v556, 1.0
    %v560 = vlog2.pop %v559
    %v561 = vmul.f32 %v560, 0.6931472
    %v562 = vmul.f32 -0.5, %v556
    %v563 = vadd.f32 %v562, 1.0
    %v564 = vmul.f32 %v563, %v556
    %v565 = vand.u32 2147483647, %v556
    %vm566 = vcmp.lt.f32.partialorder %v565, 0.0004427343
    %v567 = vsel %vm566, %v564, %v561
    %v568 = vadd.f32 %v558, 1.0
    %v569 = vlog2.pop %v568
    %v570 = vmul.f32 %v569, 0.6931472
    %v571 = vmul.f32 -0.5, %v558
    %v572 = vadd.f32 %v571, 1.0
    %v573 = vmul.f32 %v572, %v558
    %v574 = vand.u32 2147483647, %v558
    %vm575 = vcmp.lt.f32.partialorder %v574, 0.0004427343
    %v576 = vsel %vm575, %v573, %v570
    %v577 = vadd.f32 %v545, %v567
    %v578 = vadd.f32 %v546, %v576
    %v579 = vsel %vm547, %v549, %v577
    %v580 = vsel %vm548, %v550, %v578
    %v581 = vpack.c.bf16 %v580, %v579
    %s582 = scalar_lea.vmem [#allocation2], 192
    %v583 = vld [vmem:[%s582] sm:$0xf]
    %v584 = vld [vmem:[%s582 + $0x4] sm:$0xf]
    %v585 = vld [vmem:[%s582 + $0x8] sm:$0xf]
    %v586 = vld [vmem:[%s582 + $0xc] sm:$0xf]
    %v587 = vld [vmem:[%s582 + $0x10] sm:$0xf]
    %v588 = vld [vmem:[%s582 + $0x14] sm:$0xf]
    %v589 = vld [vmem:[%s582 + $0x18] sm:$0xf]
    %v590 = vld [vmem:[%s582 + $0x1c] sm:$0xf]
    %v591 = vld [vmem:[%s582 + $0x20] sm:$0xf]
    %v592 = vld [vmem:[%s582 + $0x24] sm:$0xf]
    %v593 = vld [vmem:[%s582 + $0x28] sm:$0xf]
    %v594 = vld [vmem:[%s582 + $0x2c] sm:$0xf]
    %v595 = vld [vmem:[%s582 + $0x30] sm:$0xf]
    %v596 = vld [vmem:[%s582 + $0x34] sm:$0xf]
    %v597 = vld [vmem:[%s582 + $0x38] sm:$0xf]
    %v598 = vld [vmem:[%s582 + $0x3c] sm:$0xf]
    %s599 = scalar_lea.vmem %s3, 4
    %v600 = vld [vmem:[%s599] sm:$0x1]
    %v602 = vlaneseq
    %v603 = vshrl.u32 %v602, 7
    %v604 = vsub.s32 0, %v603
    %v605 = vrot.slane %v600, %v604
    %v623 = vunpack.c.l.b16 %v583
    %v624 = vunpack.c.l.b16 %v584
    %v625 = vunpack.c.l.b16 %v585
    %v626 = vunpack.c.l.b16 %v586
    %v627 = vunpack.c.l.b16 %v587
    %v628 = vunpack.c.l.b16 %v588
    %v629 = vunpack.c.l.b16 %v589
    %v630 = vunpack.c.l.b16 %v590
    %v631 = vunpack.c.l.b16 %v591
    %v632 = vunpack.c.l.b16 %v592
    %v633 = vunpack.c.l.b16 %v593
    %v634 = vunpack.c.l.b16 %v594
    %v635 = vunpack.c.l.b16 %v595
    %v636 = vunpack.c.l.b16 %v596
    %v637 = vunpack.c.l.b16 %v597
    %v638 = vunpack.c.l.b16 %v598
    %v639 = vpack.c.b16 %v624, %v623
    %v640 = vpack.c.b16 %v626, %v625
    %v641 = vpack.c.b16 %v628, %v627
    %v642 = vpack.c.b16 %v630, %v629
    %v643 = vpack.c.b16 %v632, %v631
    %v644 = vpack.c.b16 %v634, %v633
    %v645 = vpack.c.b16 %v636, %v635
    %v646 = vpack.c.b16 %v638, %v637
    %655 = vmatprep.subr.bf16.mxu0 0
    %656 = vmatpush1.bf16.msra.mxu0 %v639
    %657 = vmatprep.subr.bf16.mxu0 0
    %658 = vmatpush1.bf16.msra.mxu0 %v640
    %659 = vmatprep.subr.bf16.mxu0 0
    %660 = vmatpush1.bf16.msra.mxu0 %v641
    %661 = vmatprep.subr.bf16.mxu0 0
    %662 = vmatpush1.bf16.msra.mxu0 %v642
    %663 = vmatprep.subr.bf16.mxu0 0
    %664 = vmatpush1.bf16.msra.mxu0 %v643
    %665 = vmatprep.subr.bf16.mxu0 0
    %666 = vmatpush1.bf16.msra.mxu0 %v644
    %667 = vmatprep.subr.bf16.mxu0 0
    %668 = vmatpush1.bf16.msra.mxu0 %v645
    %669 = vmatprep.subr.bf16.mxu0 0
    %670 = vmatpush1.bf16.msra.mxu0 %v646
    %671 = vmatprep.subr.bf16.mxu0 0
    %672 = vmatpush1.bf16.msra.mxu0 0
    %673 = vmatprep.subr.bf16.mxu0 0
    %674 = vmatpush1.bf16.msra.mxu0 0
    %675 = vmatprep.subr.bf16.mxu0 0
    %676 = vmatpush1.bf16.msra.mxu0 0
    %677 = vmatprep.subr.bf16.mxu0 0
    %678 = vmatpush1.bf16.msra.mxu0 0
    %679 = vmatprep.subr.bf16.mxu0 0
    %680 = vmatpush1.bf16.msra.mxu0 0
    %681 = vmatprep.subr.bf16.mxu0 0
    %682 = vmatpush1.bf16.msra.mxu0 0
    %683 = vmatprep.subr.bf16.mxu0 0
    %684 = vmatpush1.bf16.msra.mxu0 0
    %685 = vmatprep.subr.bf16.mxu0 0
    %686 = vmatpush1.bf16.msra.mxu0 0
    %687 = vmatprep.mubr.bf16.mxu0 0
    %688 = vmatmul.mubr.bf16.gmra.mrb[0].mxu0 %v581
    %v689 = vpop.f32.mrb[0].mxu0
    %v690 = vadd.f32 %v605, %v689
    %v691 = vpop.f32.mrb[0].mxu0
    %v692 = vpop.f32.mrb[0].mxu0
    %v693 = vadd.f32 %v605, %v692
    %v694 = vpop.f32.mrb[0].mxu0
    %695 = vdwg.mxu0
    %v696 = vmax.f32 %v690, 0.0
    %v697 = vmax.f32 %v693, 0.0
    %vm698 = vcmp.ne.f32.partialorder %v690, %v690
    %vm699 = vcmp.ne.f32.partialorder %v693, %v693
    %v700 = vadd.f32 %v690, 0.0
    %v701 = vadd.f32 %v693, 0.0
    %v702 = vand.u32 2147483647, %v690
    %v703 = vand.u32 2147483647, %v693
    %v704 = vsub.f32 0.0, %v702
    %v705 = vsub.f32 0.0, %v703
    %v706 = vmul.f32 %v704, 1.442695
    %v707 = vpow.pop %v706
    %v708 = vmul.f32 %v705, 1.442695
    %v709 = vpow.pop %v708
    %v710 = vadd.f32 %v707, 1.0
    %v711 = vlog2.pop %v710
    %v712 = vmul.f32 %v711, 0.6931472
    %v713 = vmul.f32 -0.5, %v707
    %v714 = vadd.f32 %v713, 1.0
    %v715 = vmul.f32 %v714, %v707
    %v716 = vand.u32 2147483647, %v707
    %vm717 = vcmp.lt.f32.partialorder %v716, 0.0004427343
    %v718 = vsel %vm717, %v715, %v712
    %v719 = vadd.f32 %v709, 1.0
    %v720 = vlog2.pop %v719
    %v721 = vmul.f32 %v720, 0.6931472
    %v722 = vmul.f32 -0.5, %v709
    %v723 = vadd.f32 %v722, 1.0
    %v724 = vmul.f32 %v723, %v709
    %v725 = vand.u32 2147483647, %v709
    %vm726 = vcmp.lt.f32.partialorder %v725, 0.0004427343
    %v727 = vsel %vm726, %v724, %v721
    %v728 = vadd.f32 %v696, %v718
    %v729 = vadd.f32 %v697, %v727
    %v730 = vsel %vm698, %v700, %v728
    %v731 = vsel %vm699, %v701, %v729
    %v732 = vpack.c.bf16 %v731, %v730
    %s733 = scalar_lea.vmem [#allocation2], 256
    %v734 = vld [vmem:[%s733] sm:$0xf]
    %v735 = vld [vmem:[%s733 + $0x4] sm:$0xf]
    %v736 = vld [vmem:[%s733 + $0x8] sm:$0xf]
    %v737 = vld [vmem:[%s733 + $0xc] sm:$0xf]
    %v738 = vld [vmem:[%s733 + $0x10] sm:$0xf]
    %v739 = vld [vmem:[%s733 + $0x14] sm:$0xf]
    %v740 = vld [vmem:[%s733 + $0x18] sm:$0xf]
    %v741 = vld [vmem:[%s733 + $0x1c] sm:$0xf]
    %v742 = vld [vmem:[%s733 + $0x20] sm:$0xf]
    %v743 = vld [vmem:[%s733 + $0x24] sm:$0xf]
    %v744 = vld [vmem:[%s733 + $0x28] sm:$0xf]
    %v745 = vld [vmem:[%s733 + $0x2c] sm:$0xf]
    %v746 = vld [vmem:[%s733 + $0x30] sm:$0xf]
    %v747 = vld [vmem:[%s733 + $0x34] sm:$0xf]
    %v748 = vld [vmem:[%s733 + $0x38] sm:$0xf]
    %v749 = vld [vmem:[%s733 + $0x3c] sm:$0xf]
    %s750 = scalar_lea.vmem %s3, 5
    %v751 = vld [vmem:[%s750] sm:$0x1]
    %v753 = vlaneseq
    %v754 = vshrl.u32 %v753, 7
    %v755 = vsub.s32 0, %v754
    %v756 = vrot.slane %v751, %v755
    %v774 = vunpack.c.l.b16 %v734
    %v775 = vunpack.c.l.b16 %v735
    %v776 = vunpack.c.l.b16 %v736
    %v777 = vunpack.c.l.b16 %v737
    %v778 = vunpack.c.l.b16 %v738
    %v779 = vunpack.c.l.b16 %v739
    %v780 = vunpack.c.l.b16 %v740
    %v781 = vunpack.c.l.b16 %v741
    %v782 = vunpack.c.l.b16 %v742
    %v783 = vunpack.c.l.b16 %v743
    %v784 = vunpack.c.l.b16 %v744
    %v785 = vunpack.c.l.b16 %v745
    %v786 = vunpack.c.l.b16 %v746
    %v787 = vunpack.c.l.b16 %v747
    %v788 = vunpack.c.l.b16 %v748
    %v789 = vunpack.c.l.b16 %v749
    %v790 = vpack.c.b16 %v775, %v774
    %v791 = vpack.c.b16 %v777, %v776
    %v792 = vpack.c.b16 %v779, %v778
    %v793 = vpack.c.b16 %v781, %v780
    %v794 = vpack.c.b16 %v783, %v782
    %v795 = vpack.c.b16 %v785, %v784
    %v796 = vpack.c.b16 %v787, %v786
    %v797 = vpack.c.b16 %v789, %v788
    %806 = vmatprep.subr.bf16.mxu0 0
    %807 = vmatpush1.bf16.msra.mxu0 %v790
    %808 = vmatprep.subr.bf16.mxu0 0
    %809 = vmatpush1.bf16.msra.mxu0 %v791
    %810 = vmatprep.subr.bf16.mxu0 0
    %811 = vmatpush1.bf16.msra.mxu0 %v792
    %812 = vmatprep.subr.bf16.mxu0 0
    %813 = vmatpush1.bf16.msra.mxu0 %v793
    %814 = vmatprep.subr.bf16.mxu0 0
    %815 = vmatpush1.bf16.msra.mxu0 %v794
    %816 = vmatprep.subr.bf16.mxu0 0
    %817 = vmatpush1.bf16.msra.mxu0 %v795
    %818 = vmatprep.subr.bf16.mxu0 0
    %819 = vmatpush1.bf16.msra.mxu0 %v796
    %820 = vmatprep.subr.bf16.mxu0 0
    %821 = vmatpush1.bf16.msra.mxu0 %v797
    %822 = vmatprep.subr.bf16.mxu0 0
    %823 = vmatpush1.bf16.msra.mxu0 0
    %824 = vmatprep.subr.bf16.mxu0 0
    %825 = vmatpush1.bf16.msra.mxu0 0
    %826 = vmatprep.subr.bf16.mxu0 0
    %827 = vmatpush1.bf16.msra.mxu0 0
    %828 = vmatprep.subr.bf16.mxu0 0
    %829 = vmatpush1.bf16.msra.mxu0 0
    %830 = vmatprep.subr.bf16.mxu0 0
    %831 = vmatpush1.bf16.msra.mxu0 0
    %832 = vmatprep.subr.bf16.mxu0 0
    %833 = vmatpush1.bf16.msra.mxu0 0
    %834 = vmatprep.subr.bf16.mxu0 0
    %835 = vmatpush1.bf16.msra.mxu0 0
    %836 = vmatprep.subr.bf16.mxu0 0
    %837 = vmatpush1.bf16.msra.mxu0 0
    %838 = vmatprep.mubr.bf16.mxu0 0
    %839 = vmatmul.mubr.bf16.gmra.mrb[0].mxu0 %v732
    %v840 = vpop.f32.mrb[0].mxu0
    %v841 = vadd.f32 %v756, %v840
    %v842 = vpop.f32.mrb[0].mxu0
    %v843 = vpop.f32.mrb[0].mxu0
    %v844 = vadd.f32 %v756, %v843
    %v845 = vpop.f32.mrb[0].mxu0
    %846 = vdwg.mxu0
    %v847 = vmax.f32 %v841, 0.0
    %v848 = vmax.f32 %v844, 0.0
    %vm849 = vcmp.ne.f32.partialorder %v841, %v841
    %vm850 = vcmp.ne.f32.partialorder %v844, %v844
    %v851 = vadd.f32 %v841, 0.0
    %v852 = vadd.f32 %v844, 0.0
    %v853 = vand.u32 2147483647, %v841
    %v854 = vand.u32 2147483647, %v844
    %v855 = vsub.f32 0.0, %v853
    %v856 = vsub.f32 0.0, %v854
    %v857 = vmul.f32 %v855, 1.442695
    %v858 = vpow.pop %v857
    %v859 = vmul.f32 %v856, 1.442695
    %v860 = vpow.pop %v859
    %v861 = vadd.f32 %v858, 1.0
    %v862 = vlog2.pop %v861
    %v863 = vmul.f32 %v862, 0.6931472
    %v864 = vmul.f32 -0.5, %v858
    %v865 = vadd.f32 %v864, 1.0
    %v866 = vmul.f32 %v865, %v858
    %v867 = vand.u32 2147483647, %v858
    %vm868 = vcmp.lt.f32.partialorder %v867, 0.0004427343
    %v869 = vsel %vm868, %v866, %v863
    %v870 = vadd.f32 %v860, 1.0
    %v871 = vlog2.pop %v870
    %v872 = vmul.f32 %v871, 0.6931472
    %v873 = vmul.f32 -0.5, %v860
    %v874 = vadd.f32 %v873, 1.0
    %v875 = vmul.f32 %v874, %v860
    %v876 = vand.u32 2147483647, %v860
    %vm877 = vcmp.lt.f32.partialorder %v876, 0.0004427343
    %v878 = vsel %vm877, %v875, %v872
    %v879 = vadd.f32 %v847, %v869
    %v880 = vadd.f32 %v848, %v878
    %v881 = vsel %vm849, %v851, %v879
    %v882 = vsel %vm850, %v852, %v880
    %v883 = vpack.c.bf16 %v882, %v881
    %s884 = scalar_lea.vmem [#allocation2], 320
    %v885 = vld [vmem:[%s884] sm:$0xf]
    %v886 = vld [vmem:[%s884 + $0x4] sm:$0xf]
    %v887 = vld [vmem:[%s884 + $0x8] sm:$0xf]
    %v888 = vld [vmem:[%s884 + $0xc] sm:$0xf]
    %v889 = vld [vmem:[%s884 + $0x10] sm:$0xf]
    %v890 = vld [vmem:[%s884 + $0x14] sm:$0xf]
    %v891 = vld [vmem:[%s884 + $0x18] sm:$0xf]
    %v892 = vld [vmem:[%s884 + $0x1c] sm:$0xf]
    %v893 = vld [vmem:[%s884 + $0x20] sm:$0xf]
    %v894 = vld [vmem:[%s884 + $0x24] sm:$0xf]
    %v895 = vld [vmem:[%s884 + $0x28] sm:$0xf]
    %v896 = vld [vmem:[%s884 + $0x2c] sm:$0xf]
    %v897 = vld [vmem:[%s884 + $0x30] sm:$0xf]
    %v898 = vld [vmem:[%s884 + $0x34] sm:$0xf]
    %v899 = vld [vmem:[%s884 + $0x38] sm:$0xf]
    %v900 = vld [vmem:[%s884 + $0x3c] sm:$0xf]
    %s901 = scalar_lea.vmem %s3, 6
    %v902 = vld [vmem:[%s901] sm:$0x1]
    %v904 = vlaneseq
    %v905 = vshrl.u32 %v904, 7
    %v906 = vsub.s32 0, %v905
    %v907 = vrot.slane %v902, %v906
    %v925 = vunpack.c.l.b16 %v885
    %v926 = vunpack.c.l.b16 %v886
    %v927 = vunpack.c.l.b16 %v887
    %v928 = vunpack.c.l.b16 %v888
    %v929 = vunpack.c.l.b16 %v889
    %v930 = vunpack.c.l.b16 %v890
    %v931 = vunpack.c.l.b16 %v891
    %v932 = vunpack.c.l.b16 %v892
    %v933 = vunpack.c.l.b16 %v893
    %v934 = vunpack.c.l.b16 %v894
    %v935 = vunpack.c.l.b16 %v895
    %v936 = vunpack.c.l.b16 %v896
    %v937 = vunpack.c.l.b16 %v897
    %v938 = vunpack.c.l.b16 %v898
    %v939 = vunpack.c.l.b16 %v899
    %v940 = vunpack.c.l.b16 %v900
    %v941 = vpack.c.b16 %v926, %v925
    %v942 = vpack.c.b16 %v928, %v927
    %v943 = vpack.c.b16 %v930, %v929
    %v944 = vpack.c.b16 %v932, %v931
    %v945 = vpack.c.b16 %v934, %v933
    %v946 = vpack.c.b16 %v936, %v935
    %v947 = vpack.c.b16 %v938, %v937
    %v948 = vpack.c.b16 %v940, %v939
    %957 = vmatprep.subr.bf16.mxu0 0
    %958 = vmatpush1.bf16.msra.mxu0 %v941
    %959 = vmatprep.subr.bf16.mxu0 0
    %960 = vmatpush1.bf16.msra.mxu0 %v942
    %961 = vmatprep.subr.bf16.mxu0 0
    %962 = vmatpush1.bf16.msra.mxu0 %v943
    %963 = vmatprep.subr.bf16.mxu0 0
    %964 = vmatpush1.bf16.msra.mxu0 %v944
    %965 = vmatprep.subr.bf16.mxu0 0
    %966 = vmatpush1.bf16.msra.mxu0 %v945
    %967 = vmatprep.subr.bf16.mxu0 0
    %968 = vmatpush1.bf16.msra.mxu0 %v946
    %969 = vmatprep.subr.bf16.mxu0 0
    %970 = vmatpush1.bf16.msra.mxu0 %v947
    %971 = vmatprep.subr.bf16.mxu0 0
    %972 = vmatpush1.bf16.msra.mxu0 %v948
    %973 = vmatprep.subr.bf16.mxu0 0
    %974 = vmatpush1.bf16.msra.mxu0 0
    %975 = vmatprep.subr.bf16.mxu0 0
    %976 = vmatpush1.bf16.msra.mxu0 0
    %977 = vmatprep.subr.bf16.mxu0 0
    %978 = vmatpush1.bf16.msra.mxu0 0
    %979 = vmatprep.subr.bf16.mxu0 0
    %980 = vmatpush1.bf16.msra.mxu0 0
    %981 = vmatprep.subr.bf16.mxu0 0
    %982 = vmatpush1.bf16.msra.mxu0 0
    %983 = vmatprep.subr.bf16.mxu0 0
    %984 = vmatpush1.bf16.msra.mxu0 0
    %985 = vmatprep.subr.bf16.mxu0 0
    %986 = vmatpush1.bf16.msra.mxu0 0
    %987 = vmatprep.subr.bf16.mxu0 0
    %988 = vmatpush1.bf16.msra.mxu0 0
    %989 = vmatprep.mubr.bf16.mxu0 0
    %990 = vmatmul.mubr.bf16.gmra.mrb[0].mxu0 %v883
    %v991 = vpop.f32.mrb[0].mxu0
    %v992 = vadd.f32 %v907, %v991
    %v993 = vpop.f32.mrb[0].mxu0
    %v994 = vpop.f32.mrb[0].mxu0
    %v995 = vadd.f32 %v907, %v994
    %v996 = vpop.f32.mrb[0].mxu0
    %997 = vdwg.mxu0
    %v998 = vmax.f32 %v992, 0.0
    %v999 = vmax.f32 %v995, 0.0
    %vm1000 = vcmp.ne.f32.partialorder %v992, %v992
    %vm1001 = vcmp.ne.f32.partialorder %v995, %v995
    %v1002 = vadd.f32 %v992, 0.0
    %v1003 = vadd.f32 %v995, 0.0
    %v1004 = vand.u32 2147483647, %v992
    %v1005 = vand.u32 2147483647, %v995
    %v1006 = vsub.f32 0.0, %v1004
    %v1007 = vsub.f32 0.0, %v1005
    %v1008 = vmul.f32 %v1006, 1.442695
    %v1009 = vpow.pop %v1008
    %v1010 = vmul.f32 %v1007, 1.442695
    %v1011 = vpow.pop %v1010
    %v1012 = vadd.f32 %v1009, 1.0
    %v1013 = vlog2.pop %v1012
    %v1014 = vmul.f32 %v1013, 0.6931472
    %v1015 = vmul.f32 -0.5, %v1009
    %v1016 = vadd.f32 %v1015, 1.0
    %v1017 = vmul.f32 %v1016, %v1009
    %v1018 = vand.u32 2147483647, %v1009
    %vm1019 = vcmp.lt.f32.partialorder %v1018, 0.0004427343
    %v1020 = vsel %vm1019, %v1017, %v1014
    %v1021 = vadd.f32 %v1011, 1.0
    %v1022 = vlog2.pop %v1021
    %v1023 = vmul.f32 %v1022, 0.6931472
    %v1024 = vmul.f32 -0.5, %v1011
    %v1025 = vadd.f32 %v1024, 1.0
    %v1026 = vmul.f32 %v1025, %v1011
    %v1027 = vand.u32 2147483647, %v1011
    %vm1028 = vcmp.lt.f32.partialorder %v1027, 0.0004427343
    %v1029 = vsel %vm1028, %v1026, %v1023
    %v1030 = vadd.f32 %v998, %v1020
    %v1031 = vadd.f32 %v999, %v1029
    %v1032 = vsel %vm1000, %v1002, %v1030
    %v1033 = vsel %vm1001, %v1003, %v1031
    %v1034 = vpack.c.bf16 %v1033, %v1032
    %s1035 = scalar_lea.vmem [#allocation2], 384
    %v1036 = vld [vmem:[%s1035] sm:$0xf]
    %v1037 = vld [vmem:[%s1035 + $0x4] sm:$0xf]
    %v1038 = vld [vmem:[%s1035 + $0x8] sm:$0xf]
    %v1039 = vld [vmem:[%s1035 + $0xc] sm:$0xf]
    %v1040 = vld [vmem:[%s1035 + $0x10] sm:$0xf]
    %v1041 = vld [vmem:[%s1035 + $0x14] sm:$0xf]
    %v1042 = vld [vmem:[%s1035 + $0x18] sm:$0xf]
    %v1043 = vld [vmem:[%s1035 + $0x1c] sm:$0xf]
    %v1044 = vld [vmem:[%s1035 + $0x20] sm:$0xf]
    %v1045 = vld [vmem:[%s1035 + $0x24] sm:$0xf]
    %v1046 = vld [vmem:[%s1035 + $0x28] sm:$0xf]
    %v1047 = vld [vmem:[%s1035 + $0x2c] sm:$0xf]
    %v1048 = vld [vmem:[%s1035 + $0x30] sm:$0xf]
    %v1049 = vld [vmem:[%s1035 + $0x34] sm:$0xf]
    %v1050 = vld [vmem:[%s1035 + $0x38] sm:$0xf]
    %v1051 = vld [vmem:[%s1035 + $0x3c] sm:$0xf]
    %s1052 = scalar_lea.vmem %s3, 7
    %v1053 = vld [vmem:[%s1052] sm:$0x1]
    %v1055 = vlaneseq
    %v1056 = vshrl.u32 %v1055, 7
    %v1057 = vsub.s32 0, %v1056
    %v1058 = vrot.slane %v1053, %v1057
    %v1076 = vunpack.c.l.b16 %v1036
    %v1077 = vunpack.c.l.b16 %v1037
    %v1078 = vunpack.c.l.b16 %v1038
    %v1079 = vunpack.c.l.b16 %v1039
    %v1080 = vunpack.c.l.b16 %v1040
    %v1081 = vunpack.c.l.b16 %v1041
    %v1082 = vunpack.c.l.b16 %v1042
    %v1083 = vunpack.c.l.b16 %v1043
    %v1084 = vunpack.c.l.b16 %v1044
    %v1085 = vunpack.c.l.b16 %v1045
    %v1086 = vunpack.c.l.b16 %v1046
    %v1087 = vunpack.c.l.b16 %v1047
    %v1088 = vunpack.c.l.b16 %v1048
    %v1089 = vunpack.c.l.b16 %v1049
    %v1090 = vunpack.c.l.b16 %v1050
    %v1091 = vunpack.c.l.b16 %v1051
    %v1092 = vpack.c.b16 %v1077, %v1076
    %v1093 = vpack.c.b16 %v1079, %v1078
    %v1094 = vpack.c.b16 %v1081, %v1080
    %v1095 = vpack.c.b16 %v1083, %v1082
    %v1096 = vpack.c.b16 %v1085, %v1084
    %v1097 = vpack.c.b16 %v1087, %v1086
    %v1098 = vpack.c.b16 %v1089, %v1088
    %v1099 = vpack.c.b16 %v1091, %v1090
    %1108 = vmatprep.subr.bf16.mxu0 0
    %1109 = vmatpush1.bf16.msra.mxu0 %v1092
    %1110 = vmatprep.subr.bf16.mxu0 0
    %1111 = vmatpush1.bf16.msra.mxu0 %v1093
    %1112 = vmatprep.subr.bf16.mxu0 0
    %1113 = vmatpush1.bf16.msra.mxu0 %v1094
    %1114 = vmatprep.subr.bf16.mxu0 0
    %1115 = vmatpush1.bf16.msra.mxu0 %v1095
    %1116 = vmatprep.subr.bf16.mxu0 0
    %1117 = vmatpush1.bf16.msra.mxu0 %v1096
    %1118 = vmatprep.subr.bf16.mxu0 0
    %1119 = vmatpush1.bf16.msra.mxu0 %v1097
    %1120 = vmatprep.subr.bf16.mxu0 0
    %1121 = vmatpush1.bf16.msra.mxu0 %v1098
    %1122 = vmatprep.subr.bf16.mxu0 0
    %1123 = vmatpush1.bf16.msra.mxu0 %v1099
    %1124 = vmatprep.subr.bf16.mxu0 0
    %1125 = vmatpush1.bf16.msra.mxu0 0
    %1126 = vmatprep.subr.bf16.mxu0 0
    %1127 = vmatpush1.bf16.msra.mxu0 0
    %1128 = vmatprep.subr.bf16.mxu0 0
    %1129 = vmatpush1.bf16.msra.mxu0 0
    %1130 = vmatprep.subr.bf16.mxu0 0
    %1131 = vmatpush1.bf16.msra.mxu0 0
    %1132 = vmatprep.subr.bf16.mxu0 0
    %1133 = vmatpush1.bf16.msra.mxu0 0
    %1134 = vmatprep.subr.bf16.mxu0 0
    %1135 = vmatpush1.bf16.msra.mxu0 0
    %1136 = vmatprep.subr.bf16.mxu0 0
    %1137 = vmatpush1.bf16.msra.mxu0 0
    %1138 = vmatprep.subr.bf16.mxu0 0
    %1139 = vmatpush1.bf16.msra.mxu0 0
    %1140 = vmatprep.mubr.bf16.mxu0 0
    %1141 = vmatmul.mubr.bf16.gmra.mrb[0].mxu0 %v1034
    %v1142 = vpop.f32.mrb[0].mxu0
    %v1143 = vadd.f32 %v1058, %v1142
    %v1144 = vpop.f32.mrb[0].mxu0
    %v1145 = vpop.f32.mrb[0].mxu0
    %v1146 = vadd.f32 %v1058, %v1145
    %v1147 = vpop.f32.mrb[0].mxu0
    %1148 = vdwg.mxu0
    %v1149 = vmax.f32 %v1143, 0.0
    %v1150 = vmax.f32 %v1146, 0.0
    %vm1151 = vcmp.ne.f32.partialorder %v1143, %v1143
    %vm1152 = vcmp.ne.f32.partialorder %v1146, %v1146
    %v1153 = vadd.f32 %v1143, 0.0
    %v1154 = vadd.f32 %v1146, 0.0
    %v1155 = vand.u32 2147483647, %v1143
    %v1156 = vand.u32 2147483647, %v1146
    %v1157 = vsub.f32 0.0, %v1155
    %v1158 = vsub.f32 0.0, %v1156
    %v1159 = vmul.f32 %v1157, 1.442695
    %v1160 = vpow.pop %v1159
    %v1161 = vmul.f32 %v1158, 1.442695
    %v1162 = vpow.pop %v1161
    %v1163 = vadd.f32 %v1160, 1.0
    %v1164 = vlog2.pop %v1163
    %v1165 = vmul.f32 %v1164, 0.6931472
    %v1166 = vmul.f32 -0.5, %v1160
    %v1167 = vadd.f32 %v1166, 1.0
    %v1168 = vmul.f32 %v1167, %v1160
    %v1169 = vand.u32 2147483647, %v1160
    %vm1170 = vcmp.lt.f32.partialorder %v1169, 0.0004427343
    %v1171 = vsel %vm1170, %v1168, %v1165
    %v1172 = vadd.f32 %v1162, 1.0
    %v1173 = vlog2.pop %v1172
    %v1174 = vmul.f32 %v1173, 0.6931472
    %v1175 = vmul.f32 -0.5, %v1162
    %v1176 = vadd.f32 %v1175, 1.0
    %v1177 = vmul.f32 %v1176, %v1162
    %v1178 = vand.u32 2147483647, %v1162
    %vm1179 = vcmp.lt.f32.partialorder %v1178, 0.0004427343
    %v1180 = vsel %vm1179, %v1177, %v1174
    %v1181 = vadd.f32 %v1149, %v1171
    %v1182 = vadd.f32 %v1150, %v1180
    %v1183 = vsel %vm1151, %v1153, %v1181
    %v1184 = vsel %vm1152, %v1154, %v1182
    %v1185 = vpack.c.bf16 %v1184, %v1183
    %s1186 = scalar_lea.vmem [#allocation2], 448
    %v1187 = vld [vmem:[%s1186] sm:$0xf]
    %v1188 = vld [vmem:[%s1186 + $0x4] sm:$0xf]
    %v1189 = vld [vmem:[%s1186 + $0x8] sm:$0xf]
    %v1190 = vld [vmem:[%s1186 + $0xc] sm:$0xf]
    %v1191 = vld [vmem:[%s1186 + $0x10] sm:$0xf]
    %v1192 = vld [vmem:[%s1186 + $0x14] sm:$0xf]
    %v1193 = vld [vmem:[%s1186 + $0x18] sm:$0xf]
    %v1194 = vld [vmem:[%s1186 + $0x1c] sm:$0xf]
    %v1195 = vld [vmem:[%s1186 + $0x20] sm:$0xf]
    %v1196 = vld [vmem:[%s1186 + $0x24] sm:$0xf]
    %v1197 = vld [vmem:[%s1186 + $0x28] sm:$0xf]
    %v1198 = vld [vmem:[%s1186 + $0x2c] sm:$0xf]
    %v1199 = vld [vmem:[%s1186 + $0x30] sm:$0xf]
    %v1200 = vld [vmem:[%s1186 + $0x34] sm:$0xf]
    %v1201 = vld [vmem:[%s1186 + $0x38] sm:$0xf]
    %v1202 = vld [vmem:[%s1186 + $0x3c] sm:$0xf]
    %s1203 = scalar_lea.vmem %s3, 8
    %v1204 = vld [vmem:[%s1203] sm:$0x1]
    %v1206 = vlaneseq
    %v1207 = vshrl.u32 %v1206, 7
    %v1208 = vsub.s32 0, %v1207
    %v1209 = vrot.slane %v1204, %v1208
    %v1227 = vunpack.c.l.b16 %v1187
    %v1228 = vunpack.c.l.b16 %v1188
    %v1229 = vunpack.c.l.b16 %v1189
    %v1230 = vunpack.c.l.b16 %v1190
    %v1231 = vunpack.c.l.b16 %v1191
    %v1232 = vunpack.c.l.b16 %v1192
    %v1233 = vunpack.c.l.b16 %v1193
    %v1234 = vunpack.c.l.b16 %v1194
    %v1235 = vunpack.c.l.b16 %v1195
    %v1236 = vunpack.c.l.b16 %v1196
    %v1237 = vunpack.c.l.b16 %v1197
    %v1238 = vunpack.c.l.b16 %v1198
    %v1239 = vunpack.c.l.b16 %v1199
    %v1240 = vunpack.c.l.b16 %v1200
    %v1241 = vunpack.c.l.b16 %v1201
    %v1242 = vunpack.c.l.b16 %v1202
    %v1243 = vpack.c.b16 %v1228, %v1227
    %v1244 = vpack.c.b16 %v1230, %v1229
    %v1245 = vpack.c.b16 %v1232, %v1231
    %v1246 = vpack.c.b16 %v1234, %v1233
    %v1247 = vpack.c.b16 %v1236, %v1235
    %v1248 = vpack.c.b16 %v1238, %v1237
    %v1249 = vpack.c.b16 %v1240, %v1239
    %v1250 = vpack.c.b16 %v1242, %v1241
    %1259 = vmatprep.subr.bf16.mxu0 0
    %1260 = vmatpush1.bf16.msra.mxu0 %v1243
    %1261 = vmatprep.subr.bf16.mxu0 0
    %1262 = vmatpush1.bf16.msra.mxu0 %v1244
    %1263 = vmatprep.subr.bf16.mxu0 0
    %1264 = vmatpush1.bf16.msra.mxu0 %v1245
    %1265 = vmatprep.subr.bf16.mxu0 0
    %1266 = vmatpush1.bf16.msra.mxu0 %v1246
    %1267 = vmatprep.subr.bf16.mxu0 0
    %1268 = vmatpush1.bf16.msra.mxu0 %v1247
    %1269 = vmatprep.subr.bf16.mxu0 0
    %1270 = vmatpush1.bf16.msra.mxu0 %v1248
    %1271 = vmatprep.subr.bf16.mxu0 0
    %1272 = vmatpush1.bf16.msra.mxu0 %v1249
    %1273 = vmatprep.subr.bf16.mxu0 0
    %1274 = vmatpush1.bf16.msra.mxu0 %v1250
    %1275 = vmatprep.subr.bf16.mxu0 0
    %1276 = vmatpush1.bf16.msra.mxu0 0
    %1277 = vmatprep.subr.bf16.mxu0 0
    %1278 = vmatpush1.bf16.msra.mxu0 0
    %1279 = vmatprep.subr.bf16.mxu0 0
    %1280 = vmatpush1.bf16.msra.mxu0 0
    %1281 = vmatprep.subr.bf16.mxu0 0
    %1282 = vmatpush1.bf16.msra.mxu0 0
    %1283 = vmatprep.subr.bf16.mxu0 0
    %1284 = vmatpush1.bf16.msra.mxu0 0
    %1285 = vmatprep.subr.bf16.mxu0 0
    %1286 = vmatpush1.bf16.msra.mxu0 0
    %1287 = vmatprep.subr.bf16.mxu0 0
    %1288 = vmatpush1.bf16.msra.mxu0 0
    %1289 = vmatprep.subr.bf16.mxu0 0
    %1290 = vmatpush1.bf16.msra.mxu0 0
    %1291 = vmatprep.mubr.bf16.mxu0 0
    %1292 = vmatmul.mubr.bf16.gmra.mrb[0].mxu0 %v1185
    %v1293 = vpop.f32.mrb[0].mxu0
    %v1294 = vadd.f32 %v1209, %v1293
    %v1295 = vpop.f32.mrb[0].mxu0
    %v1296 = vpop.f32.mrb[0].mxu0
    %v1297 = vadd.f32 %v1209, %v1296
    %v1298 = vpop.f32.mrb[0].mxu0
    %1299 = vdwg.mxu0
    %v1300 = vrcp.pop %v33
    %v1301 = vrcp.pop %v34
    %1303 = vset.pattern.permute.xlu0 2
    %1304 = vperm.xlu0 %1303, %v1300
    %v1305 = vpop.permute.xlu0 %1304
    %1308 = vset.pattern.permute.xlu0 2
    %1309 = vperm.xlu0 %1308, %v1301
    %v1310 = vpop.permute.xlu0 %1309
    %v1312 = vmul.f32 %v1294, %v1305
    %v1313 = vmul.f32 %v1297, %v1310
    %v1314 = vpack.c.bf16 %v1313, %v1312
    %v1316 = vunpack.c.l.b16 %v1314
    %v1317 = vunpack.c.h.b16 %v1314
    %v1318 = vpack.c.b16 %v1316, %v1316
    %v1319 = vpack.c.b16 %v1317, %v1317
    %1322 = vst [vmem:[#allocation5] sm:$0xf] %v1318
    %1323 = vst [vmem:[#allocation5 + $0x4] sm:$0xf] %v1319
    // Predicated region
    $region22: #{_scorenet_pallas.1} parent=1 // pred_check
      _
    $region23: #{_scorenet_pallas.1} parent=1 // pred_check_branch
      %1325 = sbr.rel (0) target = $region25
    $region24: #{_scorenet_pallas.1} parent=1 // pred_region
      %s1327 = ssub.s32 128, 128
      %1328 = vsyncadd [#allocation4], %s1327
      %s1329 = sshll.u32 [#allocation5], 4
      %s1330 = int_to_ptr.vmem [resolvable:$true] %s1329
      %1335 = dma.vmem_to_hbm [thread:$0]  %s1330, 128, %s4, [#allocation4], 64, 64, 4
    $region25: #{_scorenet_pallas.1} parent=1 // pred_fallthru
      _
    // Predicated region
    $region26: #{_scorenet_pallas.1} parent=1 // pred_check
      _
    $region27: #{_scorenet_pallas.1} parent=1 // pred_check_branch
      %1337 = sbr.rel (0) target = $region29
    $region28: #{_scorenet_pallas.1} parent=1 // pred_region
      %1338 = dma.done [#allocation4], 128
    $region29: #{_scorenet_pallas.1} parent=1 // pred_fallthru
      _
    %1339 = vsyncpa [#allocation3], 1
    %1340 = vsyncpa [#allocation4], 1

</llo_original>
